<compile_context>
chip_gen: v5e
topology: v5e:2x2
jax: 0.10.0
libtpu: 0.0.40
codegen_flags: <defaults>
</compile_context>

<pallas_src>
import functools
import math

import jax
import jax.numpy as jnp
from jax import lax
from jax.experimental import pallas as pl
from jax.experimental.pallas import tpu as pltpu


# ----------------------------- in-kernel helpers -----------------------------

def _layernorm_2d(x, eps=1e-5):
    """PyTorch nn.LayerNorm(normalized_shape=(T, D), elementwise_affine=False)
    applied to one batch element: normalize over ALL elements of the (T, D) slice."""
    mu = jnp.mean(x, axis=(0, 1), keepdims=True)
    var = jnp.mean((x - mu) * (x - mu), axis=(0, 1), keepdims=True)
    return (x - mu) * lax.rsqrt(var + eps)


# --------------------------------- kernel ------------------------------------

def mhsa_kernel(q_ref, k_ref, v_ref,
                wq_ref, bq_ref, wk_ref, bk_ref, wv_ref, bv_ref,
                w_ref, bw_ref, w1_ref, b1_ref, w2_ref, b2_ref,
                out_ref, *, num_heads, head_dim):
    Q = q_ref[0]          # (T, D)  one batch element per grid step
    K = k_ref[0]
    V = v_ref[0]

    # Fused per-head projections: one (T, D) @ (D, D) MXU matmul per Q/K/V
    # (heads live in contiguous column blocks of the stacked weights).
    qp = jnp.dot(Q, wq_ref[...], preferred_element_type=jnp.float32) + bq_ref[...]
    kp = jnp.dot(K, wk_ref[...], preferred_element_type=jnp.float32) + bk_ref[...]
    vp = jnp.dot(V, wv_ref[...], preferred_element_type=jnp.float32) + bv_ref[...]

    scale = jnp.float32(1.0 / math.sqrt(head_dim))

    # w(concat_i head_i) + bw  ==  bw + sum_i head_i @ W[i*hd:(i+1)*hd, :]
    # -> no lane-dim concat ever materialized; bias broadcast hoisted out of loop.
    acc = jnp.broadcast_to(bw_ref[...], Q.shape).astype(jnp.float32)
    for i in range(num_heads):
        lo, hi = i * head_dim, (i + 1) * head_dim
        qh = qp[:, lo:hi]                                             # (T, hd)
        kh = kp[:, lo:hi]
        vh = vp[:, lo:hi]
        att = jnp.dot(qh, kh.T, preferred_element_type=jnp.float32) * scale   # (T, T)
        att = jax.nn.softmax(att, axis=-1)
        ctx = jnp.dot(att, vh, preferred_element_type=jnp.float32)            # (T, hd)
        acc = acc + jnp.dot(ctx, w_ref[lo:hi, :],
                            preferred_element_type=jnp.float32)               # (T, D)

    sent = _layernorm_2d(acc + Q)

    hid = jax.nn.relu(
        jnp.dot(sent, w1_ref[...], preferred_element_type=jnp.float32) + b1_ref[...])
    lin = jnp.dot(hid, w2_ref[...], preferred_element_type=jnp.float32) + b2_ref[...]

    out_ref[0] = _layernorm_2d(sent + lin).astype(out_ref.dtype)


# --------------------------------- wrapper -----------------------------------

def mhsa_forward(params, Q, K, V, num_heads):
    B, T, D = Q.shape
    assert D % num_heads == 0
    head_dim = D // num_heads

    kernel = functools.partial(mhsa_kernel, num_heads=num_heads, head_dim=head_dim)

    seq_spec = pl.BlockSpec((1, T, D), lambda b: (b, 0, 0))

    def full(shape):
        return pl.BlockSpec(shape, lambda b, _s=shape: tuple(0 for _ in _s))

    in_specs = [
        seq_spec, seq_spec, seq_spec,          # Q, K, V
        full((D, D)), full((1, D)),            # wq, bq   (stacked heads)
        full((D, D)), full((1, D)),            # wk, bk
        full((D, D)), full((1, D)),            # wv, bv
        full((D, D)), full((1, D)),            # w,  bw
        full((D, D)), full((1, D)),            # w1, b1
        full((D, D)), full((1, D)),            # w2, b2
    ]

    return pl.pallas_call(
        kernel,
        grid=(B,),
        in_specs=in_specs,
        out_specs=seq_spec,
        out_shape=jax.ShapeDtypeStruct((B, T, D), jnp.float32),
        compiler_params=pltpu.CompilerParams(
            dimension_semantics=("parallel",)),
    )(Q, K, V,
      params["wq"], params["bq"], params["wk"], params["bk"],
      params["wv"], params["bv"], params["w"], params["bw"],
      params["w1"], params["b1"], params["w2"], params["b2"])


# ------------------------------ pure-JAX reference ----------------------------

def mhsa_ref(params, Q, K, V, num_heads):
    B, T, D = Q.shape
    hd = D // num_heads
    qp = jnp.einsum('btd,de->bte', Q, params["wq"]) + params["bq"]
    kp = jnp.einsum('btd,de->bte', K, params["wk"]) + params["bk"]
    vp = jnp.einsum('btd,de->bte', V, params["wv"]) + params["bv"]
    heads = []
    for i in range(num_heads):
        qh = qp[..., i * hd:(i + 1) * hd]
        kh = kp[..., i * hd:(i + 1) * hd]
        vh = vp[..., i * hd:(i + 1) * hd]
        att = jnp.einsum('bqd,bkd->bqk', qh, kh) / math.sqrt(hd)
        att = jax.nn.softmax(att, axis=-1)
        heads.append(jnp.einsum('bqk,bkd->bqd', att, vh))
    sent = jnp.einsum('btd,de->bte', jnp.concatenate(heads, axis=-1),
                      params["w"]) + params["bw"]

    def ln(x, eps=1e-5):
        mu = jnp.mean(x, axis=(1, 2), keepdims=True)
        var = jnp.mean((x - mu) ** 2, axis=(1, 2), keepdims=True)
        return (x - mu) / jnp.sqrt(var + eps)

    sent = ln(sent + Q)
    hid = jax.nn.relu(jnp.einsum('btd,de->bte', sent, params["w1"]) + params["b1"])
    lin = jnp.einsum('btd,de->bte', hid, params["w2"]) + params["b2"]
    return ln(sent + lin)


# ----------------------------------- main -------------------------------------

if __name__ == "__main__":
    B, T, D, M = 2, 8, 32, 4          # batch, seq, h_dim, head_cnt (hd = 8)

    key = jax.random.PRNGKey(0)
    ks = jax.random.split(key, 16)

    def w(k, shape, scale=0.1):
        return (scale * jax.random.normal(k, shape)).astype(jnp.float32)

    params = {
        "wq": w(ks[0], (D, D)), "bq": w(ks[1], (1, D)),
        "wk": w(ks[2], (D, D)), "bk": w(ks[3], (1, D)),
        "wv": w(ks[4], (D, D)), "bv": w(ks[5], (1, D)),
        "w":  w(ks[6], (D, D)), "bw": w(ks[7], (1, D)),
        "w1": w(ks[8], (D, D)), "b1": w(ks[9], (1, D)),
        "w2": w(ks[10], (D, D)), "b2": w(ks[11], (1, D)),
    }
    Q = w(ks[12], (B, T, D), 1.0)
    K = w(ks[13], (B, T, D), 1.0)
    V = w(ks[14], (B, T, D), 1.0)

    out = mhsa_forward(params, Q, K, V, M)
    out = jax.block_until_ready(out)

    ref = mhsa_ref(params, Q, K, V, M)
    assert out.shape == (B, T, D)
    assert bool(jnp.all(jnp.isfinite(out))), "non-finite output"
    max_err = float(jnp.max(jnp.abs(out - ref)))
    assert bool(jnp.allclose(out, ref, atol=2e-4, rtol=2e-4)), f"max_err={max_err}"
    print("KERNEL_OK")
</pallas_src>

<mosaic_0001>
module attributes {stable_mosaic.version = 11 : i64} {
  func.func @mhsa_kernel(%arg0: i32, %arg1: memref<1x8x32xf32, #tpu.memory_space<vmem>>, %arg2: memref<1x8x32xf32, #tpu.memory_space<vmem>>, %arg3: memref<1x8x32xf32, #tpu.memory_space<vmem>>, %arg4: memref<32x32xf32, #tpu.memory_space<vmem>>, %arg5: memref<1x32xf32, #tpu.memory_space<vmem>>, %arg6: memref<32x32xf32, #tpu.memory_space<vmem>>, %arg7: memref<1x32xf32, #tpu.memory_space<vmem>>, %arg8: memref<32x32xf32, #tpu.memory_space<vmem>>, %arg9: memref<1x32xf32, #tpu.memory_space<vmem>>, %arg10: memref<32x32xf32, #tpu.memory_space<vmem>>, %arg11: memref<1x32xf32, #tpu.memory_space<vmem>>, %arg12: memref<32x32xf32, #tpu.memory_space<vmem>>, %arg13: memref<1x32xf32, #tpu.memory_space<vmem>>, %arg14: memref<32x32xf32, #tpu.memory_space<vmem>>, %arg15: memref<1x32xf32, #tpu.memory_space<vmem>>, %arg16: memref<1x8x32xf32, #tpu.memory_space<vmem>>) attributes {dimension_semantics = [#tpu.dimension_semantics<parallel>], iteration_bounds = array<i64: 2>, scalar_prefetch = 0 : i64, scratch_operands = 0 : i64, tpu.core_type = #tpu.core_type<tc>, window_params = [{transform_indices = @transform_0, window_bounds = array<i64: 1, 8, 32>}, {transform_indices = @transform_1, window_bounds = array<i64: 1, 8, 32>}, {transform_indices = @transform_2, window_bounds = array<i64: 1, 8, 32>}, {pipeline_mode = #tpu.pipeline_mode<synchronous>, transform_indices = @transform_3, window_bounds = array<i64: 32, 32>}, {pipeline_mode = #tpu.pipeline_mode<synchronous>, transform_indices = @transform_4, window_bounds = array<i64: 1, 32>}, {pipeline_mode = #tpu.pipeline_mode<synchronous>, transform_indices = @transform_5, window_bounds = array<i64: 32, 32>}, {pipeline_mode = #tpu.pipeline_mode<synchronous>, transform_indices = @transform_6, window_bounds = array<i64: 1, 32>}, {pipeline_mode = #tpu.pipeline_mode<synchronous>, transform_indices = @transform_7, window_bounds = array<i64: 32, 32>}, {pipeline_mode = #tpu.pipeline_mode<synchronous>, transform_indices = @transform_8, window_bounds = array<i64: 1, 32>}, {pipeline_mode = #tpu.pipeline_mode<synchronous>, transform_indices = @transform_9, window_bounds = array<i64: 32, 32>}, {pipeline_mode = #tpu.pipeline_mode<synchronous>, transform_indices = @transform_10, window_bounds = array<i64: 1, 32>}, {pipeline_mode = #tpu.pipeline_mode<synchronous>, transform_indices = @transform_11, window_bounds = array<i64: 32, 32>}, {pipeline_mode = #tpu.pipeline_mode<synchronous>, transform_indices = @transform_12, window_bounds = array<i64: 1, 32>}, {pipeline_mode = #tpu.pipeline_mode<synchronous>, transform_indices = @transform_13, window_bounds = array<i64: 32, 32>}, {pipeline_mode = #tpu.pipeline_mode<synchronous>, transform_indices = @transform_14, window_bounds = array<i64: 1, 32>}, {transform_indices = @transform_15, window_bounds = array<i64: 1, 8, 32>}]} {
    %c0 = arith.constant 0 : index
    %c0_0 = arith.constant 0 : index
    %c0_1 = arith.constant 0 : index
    %0 = vector.load %arg1[%c0, %c0_0, %c0_1] : memref<1x8x32xf32, #tpu.memory_space<vmem>>, vector<1x8x32xf32>
    %1 = vector.shape_cast %0 : vector<1x8x32xf32> to vector<8x32xf32>
    %c0_2 = arith.constant 0 : index
    %c0_3 = arith.constant 0 : index
    %c0_4 = arith.constant 0 : index
    %2 = vector.load %arg2[%c0_2, %c0_3, %c0_4] : memref<1x8x32xf32, #tpu.memory_space<vmem>>, vector<1x8x32xf32>
    %3 = vector.shape_cast %2 : vector<1x8x32xf32> to vector<8x32xf32>
    %c0_5 = arith.constant 0 : index
    %c0_6 = arith.constant 0 : index
    %c0_7 = arith.constant 0 : index
    %4 = vector.load %arg3[%c0_5, %c0_6, %c0_7] : memref<1x8x32xf32, #tpu.memory_space<vmem>>, vector<1x8x32xf32>
    %5 = vector.shape_cast %4 : vector<1x8x32xf32> to vector<8x32xf32>
    %c0_8 = arith.constant 0 : index
    %c0_9 = arith.constant 0 : index
    %6 = vector.load %arg4[%c0_8, %c0_9] : memref<32x32xf32, #tpu.memory_space<vmem>>, vector<32x32xf32>
    %cst = arith.constant dense<0.000000e+00> : vector<8x32xf32>
    %7 = tpu.matmul %1, %6, %cst {dimension_numbers = #tpu.dot_dimension_numbers<[1], [0], [0], [1], [0, 0, 1, 1], [], []>} : vector<8x32xf32>, vector<32x32xf32>, vector<8x32xf32> -> vector<8x32xf32>
    %c0_10 = arith.constant 0 : index
    %c0_11 = arith.constant 0 : index
    %8 = vector.load %arg5[%c0_10, %c0_11] : memref<1x32xf32, #tpu.memory_space<vmem>>, vector<1x32xf32>
    %9 = vector.broadcast %8 : vector<1x32xf32> to vector<8x32xf32>
    %10 = arith.addf %7, %9 : vector<8x32xf32>
    %c0_12 = arith.constant 0 : index
    %c0_13 = arith.constant 0 : index
    %11 = vector.load %arg6[%c0_12, %c0_13] : memref<32x32xf32, #tpu.memory_space<vmem>>, vector<32x32xf32>
    %cst_14 = arith.constant dense<0.000000e+00> : vector<8x32xf32>
    %12 = tpu.matmul %3, %11, %cst_14 {dimension_numbers = #tpu.dot_dimension_numbers<[1], [0], [0], [1], [0, 0, 1, 1], [], []>} : vector<8x32xf32>, vector<32x32xf32>, vector<8x32xf32> -> vector<8x32xf32>
    %c0_15 = arith.constant 0 : index
    %c0_16 = arith.constant 0 : index
    %13 = vector.load %arg7[%c0_15, %c0_16] : memref<1x32xf32, #tpu.memory_space<vmem>>, vector<1x32xf32>
    %14 = vector.broadcast %13 : vector<1x32xf32> to vector<8x32xf32>
    %15 = arith.addf %12, %14 : vector<8x32xf32>
    %c0_17 = arith.constant 0 : index
    %c0_18 = arith.constant 0 : index
    %16 = vector.load %arg8[%c0_17, %c0_18] : memref<32x32xf32, #tpu.memory_space<vmem>>, vector<32x32xf32>
    %cst_19 = arith.constant dense<0.000000e+00> : vector<8x32xf32>
    %17 = tpu.matmul %5, %16, %cst_19 {dimension_numbers = #tpu.dot_dimension_numbers<[1], [0], [0], [1], [0, 0, 1, 1], [], []>} : vector<8x32xf32>, vector<32x32xf32>, vector<8x32xf32> -> vector<8x32xf32>
    %c0_20 = arith.constant 0 : index
    %c0_21 = arith.constant 0 : index
    %18 = vector.load %arg9[%c0_20, %c0_21] : memref<1x32xf32, #tpu.memory_space<vmem>>, vector<1x32xf32>
    %19 = vector.broadcast %18 : vector<1x32xf32> to vector<8x32xf32>
    %20 = arith.addf %17, %19 : vector<8x32xf32>
    %c0_22 = arith.constant 0 : index
    %c0_23 = arith.constant 0 : index
    %21 = vector.load %arg11[%c0_22, %c0_23] : memref<1x32xf32, #tpu.memory_space<vmem>>, vector<1x32xf32>
    %22 = vector.shape_cast %21 : vector<1x32xf32> to vector<1x32xf32>
    %23 = vector.broadcast %22 : vector<1x32xf32> to vector<8x32xf32>
    %24 = vector.extract_strided_slice %10 {offsets = [0, 0], sizes = [8, 8], strides = [1, 1]} : vector<8x32xf32> to vector<8x8xf32>
    %25 = vector.extract_strided_slice %15 {offsets = [0, 0], sizes = [8, 8], strides = [1, 1]} : vector<8x32xf32> to vector<8x8xf32>
    %26 = vector.extract_strided_slice %20 {offsets = [0, 0], sizes = [8, 8], strides = [1, 1]} : vector<8x32xf32> to vector<8x8xf32>
    %27 = tpu.transpose %25, [1, 0] : vector<8x8xf32> -> vector<8x8xf32>
    %cst_24 = arith.constant dense<0.000000e+00> : vector<8x8xf32>
    %28 = tpu.matmul %24, %27, %cst_24 {dimension_numbers = #tpu.dot_dimension_numbers<[1], [0], [0], [1], [0, 0, 1, 1], [], []>} : vector<8x8xf32>, vector<8x8xf32>, vector<8x8xf32> -> vector<8x8xf32>
    %cst_25 = arith.constant 0.353553385 : f32
    %29 = vector.broadcast %cst_25 : f32 to vector<8x8xf32>
    %30 = arith.mulf %28, %29 : vector<8x8xf32>
    %cst_26 = arith.constant dense<0xFF800000> : vector<8xf32>
    %31 = vector.multi_reduction <maximumf>, %30, %cst_26 [1] : vector<8x8xf32> to vector<8xf32>
    %cst_27 = arith.constant 0xFF800000 : f32
    %32 = vector.broadcast %cst_27 : f32 to vector<8xf32>
    %33 = arith.maximumf %32, %31 : vector<8xf32>
    %34 = vector.shape_cast %33 : vector<8xf32> to vector<8x1xf32>
    %35 = vector.broadcast %34 : vector<8x1xf32> to vector<8x8xf32>
    %36 = arith.subf %30, %35 : vector<8x8xf32>
    %37 = math.exp %36 : vector<8x8xf32>
    %cst_28 = arith.constant dense<0.000000e+00> : vector<8xf32>
    %38 = vector.multi_reduction <add>, %37, %cst_28 [1] : vector<8x8xf32> to vector<8xf32>
    %39 = vector.shape_cast %38 : vector<8xf32> to vector<8x1xf32>
    %40 = vector.broadcast %39 : vector<8x1xf32> to vector<8x8xf32>
    %41 = arith.divf %37, %40 : vector<8x8xf32>
    %cst_29 = arith.constant dense<0.000000e+00> : vector<8x8xf32>
    %42 = tpu.matmul %41, %26, %cst_29 {dimension_numbers = #tpu.dot_dimension_numbers<[1], [0], [0], [1], [0, 0, 1, 1], [], []>} : vector<8x8xf32>, vector<8x8xf32>, vector<8x8xf32> -> vector<8x8xf32>
    %c0_30 = arith.constant 0 : index
    %c0_31 = arith.constant 0 : index
    %43 = vector.load %arg10[%c0_30, %c0_31] : memref<32x32xf32, #tpu.memory_space<vmem>>, vector<8x32xf32>
    %cst_32 = arith.constant dense<0.000000e+00> : vector<8x32xf32>
    %44 = tpu.matmul %42, %43, %cst_32 {dimension_numbers = #tpu.dot_dimension_numbers<[1], [0], [0], [1], [0, 0, 1, 1], [], []>} : vector<8x8xf32>, vector<8x32xf32>, vector<8x32xf32> -> vector<8x32xf32>
    %45 = arith.addf %23, %44 : vector<8x32xf32>
    %46 = vector.extract_strided_slice %10 {offsets = [0, 8], sizes = [8, 8], strides = [1, 1]} : vector<8x32xf32> to vector<8x8xf32>
    %47 = vector.extract_strided_slice %15 {offsets = [0, 8], sizes = [8, 8], strides = [1, 1]} : vector<8x32xf32> to vector<8x8xf32>
    %48 = vector.extract_strided_slice %20 {offsets = [0, 8], sizes = [8, 8], strides = [1, 1]} : vector<8x32xf32> to vector<8x8xf32>
    %49 = tpu.transpose %47, [1, 0] : vector<8x8xf32> -> vector<8x8xf32>
    %cst_33 = arith.constant dense<0.000000e+00> : vector<8x8xf32>
    %50 = tpu.matmul %46, %49, %cst_33 {dimension_numbers = #tpu.dot_dimension_numbers<[1], [0], [0], [1], [0, 0, 1, 1], [], []>} : vector<8x8xf32>, vector<8x8xf32>, vector<8x8xf32> -> vector<8x8xf32>
    %cst_34 = arith.constant 0.353553385 : f32
    %51 = vector.broadcast %cst_34 : f32 to vector<8x8xf32>
    %52 = arith.mulf %50, %51 : vector<8x8xf32>
    %cst_35 = arith.constant dense<0xFF800000> : vector<8xf32>
    %53 = vector.multi_reduction <maximumf>, %52, %cst_35 [1] : vector<8x8xf32> to vector<8xf32>
    %cst_36 = arith.constant 0xFF800000 : f32
    %54 = vector.broadcast %cst_36 : f32 to vector<8xf32>
    %55 = arith.maximumf %54, %53 : vector<8xf32>
    %56 = vector.shape_cast %55 : vector<8xf32> to vector<8x1xf32>
    %57 = vector.broadcast %56 : vector<8x1xf32> to vector<8x8xf32>
    %58 = arith.subf %52, %57 : vector<8x8xf32>
    %59 = math.exp %58 : vector<8x8xf32>
    %cst_37 = arith.constant dense<0.000000e+00> : vector<8xf32>
    %60 = vector.multi_reduction <add>, %59, %cst_37 [1] : vector<8x8xf32> to vector<8xf32>
    %61 = vector.shape_cast %60 : vector<8xf32> to vector<8x1xf32>
    %62 = vector.broadcast %61 : vector<8x1xf32> to vector<8x8xf32>
    %63 = arith.divf %59, %62 : vector<8x8xf32>
    %cst_38 = arith.constant dense<0.000000e+00> : vector<8x8xf32>
    %64 = tpu.matmul %63, %48, %cst_38 {dimension_numbers = #tpu.dot_dimension_numbers<[1], [0], [0], [1], [0, 0, 1, 1], [], []>} : vector<8x8xf32>, vector<8x8xf32>, vector<8x8xf32> -> vector<8x8xf32>
    %c8 = arith.constant 8 : index
    %c0_39 = arith.constant 0 : index
    %65 = vector.load %arg10[%c8, %c0_39] : memref<32x32xf32, #tpu.memory_space<vmem>>, vector<8x32xf32>
    %cst_40 = arith.constant dense<0.000000e+00> : vector<8x32xf32>
    %66 = tpu.matmul %64, %65, %cst_40 {dimension_numbers = #tpu.dot_dimension_numbers<[1], [0], [0], [1], [0, 0, 1, 1], [], []>} : vector<8x8xf32>, vector<8x32xf32>, vector<8x32xf32> -> vector<8x32xf32>
    %67 = arith.addf %45, %66 : vector<8x32xf32>
    %68 = vector.extract_strided_slice %10 {offsets = [0, 16], sizes = [8, 8], strides = [1, 1]} : vector<8x32xf32> to vector<8x8xf32>
    %69 = vector.extract_strided_slice %15 {offsets = [0, 16], sizes = [8, 8], strides = [1, 1]} : vector<8x32xf32> to vector<8x8xf32>
    %70 = vector.extract_strided_slice %20 {offsets = [0, 16], sizes = [8, 8], strides = [1, 1]} : vector<8x32xf32> to vector<8x8xf32>
    %71 = tpu.transpose %69, [1, 0] : vector<8x8xf32> -> vector<8x8xf32>
    %cst_41 = arith.constant dense<0.000000e+00> : vector<8x8xf32>
    %72 = tpu.matmul %68, %71, %cst_41 {dimension_numbers = #tpu.dot_dimension_numbers<[1], [0], [0], [1], [0, 0, 1, 1], [], []>} : vector<8x8xf32>, vector<8x8xf32>, vector<8x8xf32> -> vector<8x8xf32>
    %cst_42 = arith.constant 0.353553385 : f32
    %73 = vector.broadcast %cst_42 : f32 to vector<8x8xf32>
    %74 = arith.mulf %72, %73 : vector<8x8xf32>
    %cst_43 = arith.constant dense<0xFF800000> : vector<8xf32>
    %75 = vector.multi_reduction <maximumf>, %74, %cst_43 [1] : vector<8x8xf32> to vector<8xf32>
    %cst_44 = arith.constant 0xFF800000 : f32
    %76 = vector.broadcast %cst_44 : f32 to vector<8xf32>
    %77 = arith.maximumf %76, %75 : vector<8xf32>
    %78 = vector.shape_cast %77 : vector<8xf32> to vector<8x1xf32>
    %79 = vector.broadcast %78 : vector<8x1xf32> to vector<8x8xf32>
    %80 = arith.subf %74, %79 : vector<8x8xf32>
    %81 = math.exp %80 : vector<8x8xf32>
    %cst_45 = arith.constant dense<0.000000e+00> : vector<8xf32>
    %82 = vector.multi_reduction <add>, %81, %cst_45 [1] : vector<8x8xf32> to vector<8xf32>
    %83 = vector.shape_cast %82 : vector<8xf32> to vector<8x1xf32>
    %84 = vector.broadcast %83 : vector<8x1xf32> to vector<8x8xf32>
    %85 = arith.divf %81, %84 : vector<8x8xf32>
    %cst_46 = arith.constant dense<0.000000e+00> : vector<8x8xf32>
    %86 = tpu.matmul %85, %70, %cst_46 {dimension_numbers = #tpu.dot_dimension_numbers<[1], [0], [0], [1], [0, 0, 1, 1], [], []>} : vector<8x8xf32>, vector<8x8xf32>, vector<8x8xf32> -> vector<8x8xf32>
    %c16 = arith.constant 16 : index
    %c0_47 = arith.constant 0 : index
    %87 = vector.load %arg10[%c16, %c0_47] : memref<32x32xf32, #tpu.memory_space<vmem>>, vector<8x32xf32>
    %cst_48 = arith.constant dense<0.000000e+00> : vector<8x32xf32>
    %88 = tpu.matmul %86, %87, %cst_48 {dimension_numbers = #tpu.dot_dimension_numbers<[1], [0], [0], [1], [0, 0, 1, 1], [], []>} : vector<8x8xf32>, vector<8x32xf32>, vector<8x32xf32> -> vector<8x32xf32>
    %89 = arith.addf %67, %88 : vector<8x32xf32>
    %90 = vector.extract_strided_slice %10 {offsets = [0, 24], sizes = [8, 8], strides = [1, 1]} : vector<8x32xf32> to vector<8x8xf32>
    %91 = vector.extract_strided_slice %15 {offsets = [0, 24], sizes = [8, 8], strides = [1, 1]} : vector<8x32xf32> to vector<8x8xf32>
    %92 = vector.extract_strided_slice %20 {offsets = [0, 24], sizes = [8, 8], strides = [1, 1]} : vector<8x32xf32> to vector<8x8xf32>
    %93 = tpu.transpose %91, [1, 0] : vector<8x8xf32> -> vector<8x8xf32>
    %cst_49 = arith.constant dense<0.000000e+00> : vector<8x8xf32>
    %94 = tpu.matmul %90, %93, %cst_49 {dimension_numbers = #tpu.dot_dimension_numbers<[1], [0], [0], [1], [0, 0, 1, 1], [], []>} : vector<8x8xf32>, vector<8x8xf32>, vector<8x8xf32> -> vector<8x8xf32>
    %cst_50 = arith.constant 0.353553385 : f32
    %95 = vector.broadcast %cst_50 : f32 to vector<8x8xf32>
    %96 = arith.mulf %94, %95 : vector<8x8xf32>
    %cst_51 = arith.constant dense<0xFF800000> : vector<8xf32>
    %97 = vector.multi_reduction <maximumf>, %96, %cst_51 [1] : vector<8x8xf32> to vector<8xf32>
    %cst_52 = arith.constant 0xFF800000 : f32
    %98 = vector.broadcast %cst_52 : f32 to vector<8xf32>
    %99 = arith.maximumf %98, %97 : vector<8xf32>
    %100 = vector.shape_cast %99 : vector<8xf32> to vector<8x1xf32>
    %101 = vector.broadcast %100 : vector<8x1xf32> to vector<8x8xf32>
    %102 = arith.subf %96, %101 : vector<8x8xf32>
    %103 = math.exp %102 : vector<8x8xf32>
    %cst_53 = arith.constant dense<0.000000e+00> : vector<8xf32>
    %104 = vector.multi_reduction <add>, %103, %cst_53 [1] : vector<8x8xf32> to vector<8xf32>
    %105 = vector.shape_cast %104 : vector<8xf32> to vector<8x1xf32>
    %106 = vector.broadcast %105 : vector<8x1xf32> to vector<8x8xf32>
    %107 = arith.divf %103, %106 : vector<8x8xf32>
    %cst_54 = arith.constant dense<0.000000e+00> : vector<8x8xf32>
    %108 = tpu.matmul %107, %92, %cst_54 {dimension_numbers = #tpu.dot_dimension_numbers<[1], [0], [0], [1], [0, 0, 1, 1], [], []>} : vector<8x8xf32>, vector<8x8xf32>, vector<8x8xf32> -> vector<8x8xf32>
    %c24 = arith.constant 24 : index
    %c0_55 = arith.constant 0 : index
    %109 = vector.load %arg10[%c24, %c0_55] : memref<32x32xf32, #tpu.memory_space<vmem>>, vector<8x32xf32>
    %cst_56 = arith.constant dense<0.000000e+00> : vector<8x32xf32>
    %110 = tpu.matmul %108, %109, %cst_56 {dimension_numbers = #tpu.dot_dimension_numbers<[1], [0], [0], [1], [0, 0, 1, 1], [], []>} : vector<8x8xf32>, vector<8x32xf32>, vector<8x32xf32> -> vector<8x32xf32>
    %111 = arith.addf %89, %110 : vector<8x32xf32>
    %112 = arith.addf %111, %1 : vector<8x32xf32>
    %113 = vector.shape_cast %112 : vector<8x32xf32> to vector<1x8x32xf32>
    %cst_57 = arith.constant dense<0.000000e+00> : vector<1xf32>
    %114 = vector.multi_reduction <add>, %113, %cst_57 [1, 2] : vector<1x8x32xf32> to vector<1xf32>
    %115 = vector.shape_cast %114 : vector<1xf32> to vector<1x1x1xf32>
    %116 = vector.extract %115[0, 0, 0] : f32 from vector<1x1x1xf32>
    %117 = vector.broadcast %116 : f32 to vector<1x1xf32>
    %cst_58 = arith.constant 2.560000e+02 : f32
    %118 = vector.broadcast %cst_58 : f32 to vector<1x1xf32>
    %119 = arith.divf %117, %118 : vector<1x1xf32>
    %120 = vector.broadcast %119 : vector<1x1xf32> to vector<8x32xf32>
    %121 = arith.subf %112, %120 : vector<8x32xf32>
    %122 = vector.broadcast %119 : vector<1x1xf32> to vector<8x32xf32>
    %123 = arith.subf %112, %122 : vector<8x32xf32>
    %124 = arith.mulf %121, %123 : vector<8x32xf32>
    %125 = vector.shape_cast %124 : vector<8x32xf32> to vector<1x8x32xf32>
    %cst_59 = arith.constant dense<0.000000e+00> : vector<1xf32>
    %126 = vector.multi_reduction <add>, %125, %cst_59 [1, 2] : vector<1x8x32xf32> to vector<1xf32>
    %127 = vector.shape_cast %126 : vector<1xf32> to vector<1x1x1xf32>
    %128 = vector.extract %127[0, 0, 0] : f32 from vector<1x1x1xf32>
    %129 = vector.broadcast %128 : f32 to vector<1x1xf32>
    %cst_60 = arith.constant 2.560000e+02 : f32
    %130 = vector.broadcast %cst_60 : f32 to vector<1x1xf32>
    %131 = arith.divf %129, %130 : vector<1x1xf32>
    %132 = vector.broadcast %119 : vector<1x1xf32> to vector<8x32xf32>
    %133 = arith.subf %112, %132 : vector<8x32xf32>
    %cst_61 = arith.constant 9.99999974E-6 : f32
    %134 = vector.broadcast %cst_61 : f32 to vector<1x1xf32>
    %135 = arith.addf %131, %134 : vector<1x1xf32>
    %136 = math.rsqrt %135 : vector<1x1xf32>
    %137 = vector.broadcast %136 : vector<1x1xf32> to vector<8x32xf32>
    %138 = arith.mulf %133, %137 : vector<8x32xf32>
    %c0_62 = arith.constant 0 : index
    %c0_63 = arith.constant 0 : index
    %139 = vector.load %arg12[%c0_62, %c0_63] : memref<32x32xf32, #tpu.memory_space<vmem>>, vector<32x32xf32>
    %cst_64 = arith.constant dense<0.000000e+00> : vector<8x32xf32>
    %140 = tpu.matmul %138, %139, %cst_64 {dimension_numbers = #tpu.dot_dimension_numbers<[1], [0], [0], [1], [0, 0, 1, 1], [], []>} : vector<8x32xf32>, vector<32x32xf32>, vector<8x32xf32> -> vector<8x32xf32>
    %c0_65 = arith.constant 0 : index
    %c0_66 = arith.constant 0 : index
    %141 = vector.load %arg13[%c0_65, %c0_66] : memref<1x32xf32, #tpu.memory_space<vmem>>, vector<1x32xf32>
    %142 = vector.broadcast %141 : vector<1x32xf32> to vector<8x32xf32>
    %143 = arith.addf %140, %142 : vector<8x32xf32>
    %cst_67 = arith.constant 0.000000e+00 : f32
    %144 = vector.broadcast %cst_67 : f32 to vector<8x32xf32>
    %145 = arith.maximumf %143, %144 : vector<8x32xf32>
    %c0_68 = arith.constant 0 : index
    %c0_69 = arith.constant 0 : index
    %146 = vector.load %arg14[%c0_68, %c0_69] : memref<32x32xf32, #tpu.memory_space<vmem>>, vector<32x32xf32>
    %cst_70 = arith.constant dense<0.000000e+00> : vector<8x32xf32>
    %147 = tpu.matmul %145, %146, %cst_70 {dimension_numbers = #tpu.dot_dimension_numbers<[1], [0], [0], [1], [0, 0, 1, 1], [], []>} : vector<8x32xf32>, vector<32x32xf32>, vector<8x32xf32> -> vector<8x32xf32>
    %c0_71 = arith.constant 0 : index
    %c0_72 = arith.constant 0 : index
    %148 = vector.load %arg15[%c0_71, %c0_72] : memref<1x32xf32, #tpu.memory_space<vmem>>, vector<1x32xf32>
    %149 = vector.broadcast %148 : vector<1x32xf32> to vector<8x32xf32>
    %150 = arith.addf %147, %149 : vector<8x32xf32>
    %151 = arith.addf %138, %150 : vector<8x32xf32>
    %152 = vector.shape_cast %151 : vector<8x32xf32> to vector<1x8x32xf32>
    %cst_73 = arith.constant dense<0.000000e+00> : vector<1xf32>
    %153 = vector.multi_reduction <add>, %152, %cst_73 [1, 2] : vector<1x8x32xf32> to vector<1xf32>
    %154 = vector.shape_cast %153 : vector<1xf32> to vector<1x1x1xf32>
    %155 = vector.extract %154[0, 0, 0] : f32 from vector<1x1x1xf32>
    %156 = vector.broadcast %155 : f32 to vector<1x1xf32>
    %cst_74 = arith.constant 2.560000e+02 : f32
    %157 = vector.broadcast %cst_74 : f32 to vector<1x1xf32>
    %158 = arith.divf %156, %157 : vector<1x1xf32>
    %159 = vector.broadcast %158 : vector<1x1xf32> to vector<8x32xf32>
    %160 = arith.subf %151, %159 : vector<8x32xf32>
    %161 = vector.broadcast %158 : vector<1x1xf32> to vector<8x32xf32>
    %162 = arith.subf %151, %161 : vector<8x32xf32>
    %163 = arith.mulf %160, %162 : vector<8x32xf32>
    %164 = vector.shape_cast %163 : vector<8x32xf32> to vector<1x8x32xf32>
    %cst_75 = arith.constant dense<0.000000e+00> : vector<1xf32>
    %165 = vector.multi_reduction <add>, %164, %cst_75 [1, 2] : vector<1x8x32xf32> to vector<1xf32>
    %166 = vector.shape_cast %165 : vector<1xf32> to vector<1x1x1xf32>
    %167 = vector.extract %166[0, 0, 0] : f32 from vector<1x1x1xf32>
    %168 = vector.broadcast %167 : f32 to vector<1x1xf32>
    %cst_76 = arith.constant 2.560000e+02 : f32
    %169 = vector.broadcast %cst_76 : f32 to vector<1x1xf32>
    %170 = arith.divf %168, %169 : vector<1x1xf32>
    %171 = vector.broadcast %158 : vector<1x1xf32> to vector<8x32xf32>
    %172 = arith.subf %151, %171 : vector<8x32xf32>
    %cst_77 = arith.constant 9.99999974E-6 : f32
    %173 = vector.broadcast %cst_77 : f32 to vector<1x1xf32>
    %174 = arith.addf %170, %173 : vector<1x1xf32>
    %175 = math.rsqrt %174 : vector<1x1xf32>
    %176 = vector.broadcast %175 : vector<1x1xf32> to vector<8x32xf32>
    %177 = arith.mulf %172, %176 : vector<8x32xf32>
    %c0_78 = arith.constant 0 : index
    %c0_79 = arith.constant 0 : index
    %c0_80 = arith.constant 0 : index
    %178 = vector.load %arg16[%c0_78, %c0_79, %c0_80] : memref<1x8x32xf32, #tpu.memory_space<vmem>>, vector<1x8x32xf32>
    %179 = vector.shape_cast %178 : vector<1x8x32xf32> to vector<8x32xf32>
    %180 = vector.shape_cast %177 : vector<8x32xf32> to vector<1x8x32xf32>
    tpu.vector_store %arg16[%c0_78, %c0_79, %c0_80], %180 {strides = array<i32>} : memref<1x8x32xf32, #tpu.memory_space<vmem>>, vector<1x8x32xf32>,
    return
  }
  func.func @transform_0(%arg0: i32) -> (i32, i32, i32) {
    %c0_i32 = arith.constant 0 : i32
    %c0_i32_0 = arith.constant 0 : i32
    %c0_i32_1 = arith.constant 0 : i32
    return %arg0, %c0_i32, %c0_i32_0 : i32, i32, i32
  }
  func.func @transform_1(%arg0: i32) -> (i32, i32, i32) {
    %c0_i32 = arith.constant 0 : i32
    %c0_i32_0 = arith.constant 0 : i32
    %c0_i32_1 = arith.constant 0 : i32
    return %arg0, %c0_i32, %c0_i32_0 : i32, i32, i32
  }
  func.func @transform_2(%arg0: i32) -> (i32, i32, i32) {
    %c0_i32 = arith.constant 0 : i32
    %c0_i32_0 = arith.constant 0 : i32
    %c0_i32_1 = arith.constant 0 : i32
    return %arg0, %c0_i32, %c0_i32_0 : i32, i32, i32
  }
  func.func @transform_3(%arg0: i32) -> (i32, i32) {
    %c0_i32 = arith.constant 0 : i32
    %c0_i32_0 = arith.constant 0 : i32
    %c0_i32_1 = arith.constant 0 : i32
    return %c0_i32, %c0_i32_0 : i32, i32
  }
  func.func @transform_4(%arg0: i32) -> (i32, i32) {
    %c0_i32 = arith.constant 0 : i32
    %c0_i32_0 = arith.constant 0 : i32
    %c0_i32_1 = arith.constant 0 : i32
    return %c0_i32, %c0_i32_0 : i32, i32
  }
  func.func @transform_5(%arg0: i32) -> (i32, i32) {
    %c0_i32 = arith.constant 0 : i32
    %c0_i32_0 = arith.constant 0 : i32
    %c0_i32_1 = arith.constant 0 : i32
    return %c0_i32, %c0_i32_0 : i32, i32
  }
  func.func @transform_6(%arg0: i32) -> (i32, i32) {
    %c0_i32 = arith.constant 0 : i32
    %c0_i32_0 = arith.constant 0 : i32
    %c0_i32_1 = arith.constant 0 : i32
    return %c0_i32, %c0_i32_0 : i32, i32
  }
  func.func @transform_7(%arg0: i32) -> (i32, i32) {
    %c0_i32 = arith.constant 0 : i32
    %c0_i32_0 = arith.constant 0 : i32
    %c0_i32_1 = arith.constant 0 : i32
    return %c0_i32, %c0_i32_0 : i32, i32
  }
  func.func @transform_8(%arg0: i32) -> (i32, i32) {
    %c0_i32 = arith.constant 0 : i32
    %c0_i32_0 = arith.constant 0 : i32
    %c0_i32_1 = arith.constant 0 : i32
    return %c0_i32, %c0_i32_0 : i32, i32
  }
  func.func @transform_9(%arg0: i32) -> (i32, i32) {
    %c0_i32 = arith.constant 0 : i32
    %c0_i32_0 = arith.constant 0 : i32
    %c0_i32_1 = arith.constant 0 : i32
    return %c0_i32, %c0_i32_0 : i32, i32
  }
  func.func @transform_10(%arg0: i32) -> (i32, i32) {
    %c0_i32 = arith.constant 0 : i32
    %c0_i32_0 = arith.constant 0 : i32
    %c0_i32_1 = arith.constant 0 : i32
    return %c0_i32, %c0_i32_0 : i32, i32
  }
  func.func @transform_11(%arg0: i32) -> (i32, i32) {
    %c0_i32 = arith.constant 0 : i32
    %c0_i32_0 = arith.constant 0 : i32
    %c0_i32_1 = arith.constant 0 : i32
    return %c0_i32, %c0_i32_0 : i32, i32
  }
  func.func @transform_12(%arg0: i32) -> (i32, i32) {
    %c0_i32 = arith.constant 0 : i32
    %c0_i32_0 = arith.constant 0 : i32
    %c0_i32_1 = arith.constant 0 : i32
    return %c0_i32, %c0_i32_0 : i32, i32
  }
  func.func @transform_13(%arg0: i32) -> (i32, i32) {
    %c0_i32 = arith.constant 0 : i32
    %c0_i32_0 = arith.constant 0 : i32
    %c0_i32_1 = arith.constant 0 : i32
    return %c0_i32, %c0_i32_0 : i32, i32
  }
  func.func @transform_14(%arg0: i32) -> (i32, i32) {
    %c0_i32 = arith.constant 0 : i32
    %c0_i32_0 = arith.constant 0 : i32
    %c0_i32_1 = arith.constant 0 : i32
    return %c0_i32, %c0_i32_0 : i32, i32
  }
  func.func @transform_15(%arg0: i32) -> (i32, i32, i32) {
    %c0_i32 = arith.constant 0 : i32
    %c0_i32_0 = arith.constant 0 : i32
    %c0_i32_1 = arith.constant 0 : i32
    return %arg0, %c0_i32, %c0_i32_0 : i32, i32, i32
  }
}

</mosaic_0001>

<llo_original>
// kernel: tpu_custom_call.1
$region0: #{tpu_custom_call.1}
  #allocation0 [shape = 'u32[]', space=smem, size = 0x4, offset = 0x4, fixed_abs, tag = 'smem constant byte address 0x4 - core index']
  #allocation1 [shape = 'u32[72,128]{1,0:T(1,128)}', space=vmem, size = 0x9000, scoped, tag = 'internal scratch']
  %s0 = inlined_call_operand.hbm [shape: f32[2,8,32], index: 0, kind: input, shape index: {}]
  %s1 = inlined_call_operand.hbm [shape: f32[2,8,32], index: 1, kind: input, shape index: {}]
  %s2 = inlined_call_operand.hbm [shape: f32[2,8,32], index: 2, kind: input, shape index: {}]
  %s3 = inlined_call_operand.hbm [shape: f32[32,32], index: 3, kind: input, shape index: {}]
  %s4 = inlined_call_operand.vmem [shape: f32[1,32], index: 4, kind: input, shape index: {}]
  %s5 = inlined_call_operand.hbm [shape: f32[32,32], index: 5, kind: input, shape index: {}]
  %s6 = inlined_call_operand.vmem [shape: f32[1,32], index: 6, kind: input, shape index: {}]
  %s7 = inlined_call_operand.hbm [shape: f32[32,32], index: 7, kind: input, shape index: {}]
  %s8 = inlined_call_operand.vmem [shape: f32[1,32], index: 8, kind: input, shape index: {}]
  %s9 = inlined_call_operand.hbm [shape: f32[32,32], index: 9, kind: input, shape index: {}]
  %s10 = inlined_call_operand.vmem [shape: f32[1,32], index: 10, kind: input, shape index: {}]
  %s11 = inlined_call_operand.hbm [shape: f32[32,32], index: 11, kind: input, shape index: {}]
  %s12 = inlined_call_operand.vmem [shape: f32[1,32], index: 12, kind: input, shape index: {}]
  %s13 = inlined_call_operand.hbm [shape: f32[32,32], index: 13, kind: input, shape index: {}]
  %s14 = inlined_call_operand.vmem [shape: f32[1,32], index: 14, kind: input, shape index: {}]
  %s15 = inlined_call_operand.hbm [shape: f32[2,8,32], index: 15, kind: output, shape index: {}]
  %s16 = sld [smem:[#allocation0]]
  $region129: #{tpu_custom_call.1} parent=0
    _
  %s18 = ssub.s32 1, %s16
  %s19 = scalar_select 0, %s18, %s16
  $region1: #{tpu_custom_call.1} parent=0
    #allocation2 [shape = 'u8[8192]{0}', space=vmem, size = 0x2000, scoped, tag = 'input window, operand 0']
    #allocation3 [shape = 's32[2]{0}', space=sflag, size = 0x8, scoped, tag = 'scoped memory for tpu_custom_call.1']
    #allocation4 [shape = 's32[2]{0}', space=sflag, size = 0x8, scoped, tag = 'scoped memory for tpu_custom_call.1']
    #allocation5 [shape = 'u8[8192]{0}', space=vmem, size = 0x2000, scoped, tag = 'input window, operand 1']
    #allocation6 [shape = 's32[2]{0}', space=sflag, size = 0x8, scoped, tag = 'scoped memory for tpu_custom_call.1']
    #allocation7 [shape = 'u8[8192]{0}', space=vmem, size = 0x2000, scoped, tag = 'input window, operand 2']
    #allocation8 [shape = 'u8[16384]{0}', space=vmem, size = 0x4000, scoped, tag = 'input window, operand 3, single buffered']
    #allocation9 [shape = 's32[1]{0}', space=sflag, size = 0x4, scoped, tag = 'scoped memory for tpu_custom_call.1']
    #allocation10 [shape = 'u8[16384]{0}', space=vmem, size = 0x4000, scoped, tag = 'input window, operand 5, single buffered']
    #allocation11 [shape = 'u8[16384]{0}', space=vmem, size = 0x4000, scoped, tag = 'input window, operand 7, single buffered']
    #allocation12 [shape = 's32[1]{0}', space=sflag, size = 0x4, scoped, tag = 'scoped memory for tpu_custom_call.1']
    #allocation13 [shape = 'u8[16384]{0}', space=vmem, size = 0x4000, scoped, tag = 'input window, operand 9, single buffered']
    #allocation14 [shape = 'u8[16384]{0}', space=vmem, size = 0x4000, scoped, tag = 'input window, operand 11, single buffered']
    #allocation15 [shape = 's32[1]{0}', space=sflag, size = 0x4, scoped, tag = 'scoped memory for tpu_custom_call.1']
    #allocation16 [shape = 'u8[16384]{0}', space=vmem, size = 0x4000, scoped, tag = 'input window, operand 13, single buffered']
    #allocation17 [shape = 'u8[8192]{0}', space=vmem, size = 0x2000, scoped, tag = 'output window, operand 0']
    %20 = vsyncpa [#allocation3], 0
    %s21 = scalar_lea.sflag [#allocation3], 1
    %22 = vsyncpa %s21, 0
    %23 = vsyncpa [#allocation6], 0
    %s24 = scalar_lea.sflag [#allocation6], 1
    %25 = vsyncpa %s24, 0
    %26 = vsyncpa [#allocation9], 0
    %27 = vsyncpa [#allocation12], 0
    %28 = vsyncpa [#allocation15], 0
    %29 = vsyncpa [#allocation4], 0
    %s30 = scalar_lea.sflag [#allocation4], 1
    %31 = vsyncpa %s30, 0
    loop: start=0, step=1, limit=4
    $region2: #{tpu_custom_call.1} parent=1 // loop_pre_header
      _
    $region3: #{tpu_custom_call.1} parent=1 // loop_header
      %s33 = sphi 0, %s37
      %p34 = scmp.ge.s32.totalorder %s33, 4
      %s43 = sphi 0, %s45
      %s46 = sphi 0, %s43
      %s47 = sphi 0, %s46
      %s63 = sphi 0, %s47
      %s69 = sphi 0, %s71
      %s72 = sphi 0, %s69
      %s73 = sphi 0, %s72
      %s89 = sphi 0, %s73
      %s95 = sphi 0, %s97
      %s98 = sphi 0, %s95
      %s99 = sphi 0, %s98
      %s115 = sphi 0, %s99
      %s119 = sphi 0, %s119
      %s121 = sphi 0, %s119
      %s122 = sphi 0, %s121
      %s136 = sphi 0, %s122
      %s140 = sphi 0, %s140
      %s142 = sphi 0, %s140
      %s143 = sphi 0, %s142
      %s157 = sphi 0, %s143
      %s161 = sphi 0, %s161
      %s163 = sphi 0, %s161
      %s164 = sphi 0, %s163
      %s178 = sphi 0, %s164
      %s182 = sphi 0, %s182
      %s184 = sphi 0, %s182
      %s185 = sphi 0, %s184
      %s199 = sphi 0, %s185
      %s203 = sphi 0, %s203
      %s205 = sphi 0, %s203
      %s206 = sphi 0, %s205
      %s220 = sphi 0, %s206
      %s224 = sphi 0, %s224
      %s226 = sphi 0, %s224
      %s227 = sphi 0, %s226
      %s241 = sphi 0, %s227
      %s245 = sphi 0, %s245
      %s247 = sphi 0, %s245
      %s248 = sphi 0, %s247
      %s262 = sphi 0, %s248
      %s266 = sphi 0, %s266
      %s268 = sphi 0, %s266
      %s269 = sphi 0, %s268
      %s283 = sphi 0, %s269
      %s287 = sphi 0, %s287
      %s289 = sphi 0, %s287
      %s290 = sphi 0, %s289
      %s304 = sphi 0, %s290
      %s308 = sphi 0, %s308
      %s310 = sphi 0, %s308
      %s311 = sphi 0, %s310
      %s325 = sphi 0, %s311
      %s329 = sphi 0, %s329
      %s331 = sphi 0, %s329
      %s332 = sphi 0, %s331
      %s346 = sphi 0, %s332
      %s350 = sphi 0, %s350
      %s352 = sphi 0, %s350
      %s353 = sphi 0, %s352
      %s367 = sphi 0, %s353
      %s373 = sphi 0, %s375
      %s376 = sphi 0, %s373
      %s377 = sphi 0, %s376
      %s393 = sphi 0, %s377
    $region4: #{tpu_custom_call.1} parent=1 // loop_header_branch
      %36 = sbr.rel (%p34) target = $region8
    $region5: #{tpu_custom_call.1} parent=1 // loop_body
      %s38 = ssub.s32 %s33, 1
      %s39 = ssub.s32 %s33, 2
      %s40 = sadd.s32 %s33, 1
      %s41 = ssub.s32 %s33, %s40
      %p42 = scmp.eq.s32.totalorder %s41, 0
      %s44 = sadd.s32 %s43, 1
      %s45 = scalar_select %p42, %s43, %s44
      %p48 = pneg %p42
      %p49 = scmp.eq.s32.totalorder %s33, 1
      %p50 = por %p48, %p49
      %p51 = scmp.ne.s32.totalorder %s43, %s46
      %p52 = scmp.eq.s32.totalorder %s33, 0
      %p53 = por %p51, %p52
      %p54 = scmp.ne.s32.totalorder %s43, %s46
      %p55 = scmp.eq.s32.totalorder %s38, 1
      %p56 = por %p54, %p55
      %p57 = scmp.ne.s32.totalorder %s46, %s47
      %p58 = scmp.eq.s32.totalorder %s38, 0
      %p59 = por %p57, %p58
      %p60 = scmp.ne.s32.totalorder %s46, %s47
      %p61 = scmp.eq.s32.totalorder %s39, 1
      %p62 = por %p60, %p61
      %p64 = scmp.ne.s32.totalorder %s47, %s63
      %p65 = scmp.eq.s32.totalorder %s39, 0
      %p66 = por %p64, %p65
      %s67 = ssub.s32 %s33, %s40
      %p68 = scmp.eq.s32.totalorder %s67, 0
      %s70 = sadd.s32 %s69, 1
      %s71 = scalar_select %p68, %s69, %s70
      %p74 = pneg %p68
      %p75 = scmp.eq.s32.totalorder %s33, 1
      %p76 = por %p74, %p75
      %p77 = scmp.ne.s32.totalorder %s69, %s72
      %p78 = scmp.eq.s32.totalorder %s33, 0
      %p79 = por %p77, %p78
      %p80 = scmp.ne.s32.totalorder %s69, %s72
      %p81 = scmp.eq.s32.totalorder %s38, 1
      %p82 = por %p80, %p81
      %p83 = scmp.ne.s32.totalorder %s72, %s73
      %p84 = scmp.eq.s32.totalorder %s38, 0
      %p85 = por %p83, %p84
      %p86 = scmp.ne.s32.totalorder %s72, %s73
      %p87 = scmp.eq.s32.totalorder %s39, 1
      %p88 = por %p86, %p87
      %p90 = scmp.ne.s32.totalorder %s73, %s89
      %p91 = scmp.eq.s32.totalorder %s39, 0
      %p92 = por %p90, %p91
      %s93 = ssub.s32 %s33, %s40
      %p94 = scmp.eq.s32.totalorder %s93, 0
      %s96 = sadd.s32 %s95, 1
      %s97 = scalar_select %p94, %s95, %s96
      %p100 = pneg %p94
      %p101 = scmp.eq.s32.totalorder %s33, 1
      %p102 = por %p100, %p101
      %p103 = scmp.ne.s32.totalorder %s95, %s98
      %p104 = scmp.eq.s32.totalorder %s33, 0
      %p105 = por %p103, %p104
      %p106 = scmp.ne.s32.totalorder %s95, %s98
      %p107 = scmp.eq.s32.totalorder %s38, 1
      %p108 = por %p106, %p107
      %p109 = scmp.ne.s32.totalorder %s98, %s99
      %p110 = scmp.eq.s32.totalorder %s38, 0
      %p111 = por %p109, %p110
      %p112 = scmp.ne.s32.totalorder %s98, %s99
      %p113 = scmp.eq.s32.totalorder %s39, 1
      %p114 = por %p112, %p113
      %p116 = scmp.ne.s32.totalorder %s99, %s115
      %p117 = scmp.eq.s32.totalorder %s39, 0
      %p118 = por %p116, %p117
      %s120 = sadd.s32 %s119, 1
      %p123 = scmp.eq.s32.totalorder %s33, 1
      %p124 = scmp.ne.s32.totalorder %s119, %s121
      %p125 = scmp.eq.s32.totalorder %s33, 0
      %p126 = por %p124, %p125
      %p127 = scmp.ne.s32.totalorder %s119, %s121
      %p128 = scmp.eq.s32.totalorder %s38, 1
      %p129 = por %p127, %p128
      %p130 = scmp.ne.s32.totalorder %s121, %s122
      %p131 = scmp.eq.s32.totalorder %s38, 0
      %p132 = por %p130, %p131
      %p133 = scmp.ne.s32.totalorder %s121, %s122
      %p134 = scmp.eq.s32.totalorder %s39, 1
      %p135 = por %p133, %p134
      %p137 = scmp.ne.s32.totalorder %s122, %s136
      %p138 = scmp.eq.s32.totalorder %s39, 0
      %p139 = por %p137, %p138
      %s141 = sadd.s32 %s140, 1
      %p144 = scmp.eq.s32.totalorder %s33, 1
      %p145 = scmp.ne.s32.totalorder %s140, %s142
      %p146 = scmp.eq.s32.totalorder %s33, 0
      %p147 = por %p145, %p146
      %p148 = scmp.ne.s32.totalorder %s140, %s142
      %p149 = scmp.eq.s32.totalorder %s38, 1
      %p150 = por %p148, %p149
      %p151 = scmp.ne.s32.totalorder %s142, %s143
      %p152 = scmp.eq.s32.totalorder %s38, 0
      %p153 = por %p151, %p152
      %p154 = scmp.ne.s32.totalorder %s142, %s143
      %p155 = scmp.eq.s32.totalorder %s39, 1
      %p156 = por %p154, %p155
      %p158 = scmp.ne.s32.totalorder %s143, %s157
      %p159 = scmp.eq.s32.totalorder %s39, 0
      %p160 = por %p158, %p159
      %s162 = sadd.s32 %s161, 1
      %p165 = scmp.eq.s32.totalorder %s33, 1
      %p166 = scmp.ne.s32.totalorder %s161, %s163
      %p167 = scmp.eq.s32.totalorder %s33, 0
      %p168 = por %p166, %p167
      %p169 = scmp.ne.s32.totalorder %s161, %s163
      %p170 = scmp.eq.s32.totalorder %s38, 1
      %p171 = por %p169, %p170
      %p172 = scmp.ne.s32.totalorder %s163, %s164
      %p173 = scmp.eq.s32.totalorder %s38, 0
      %p174 = por %p172, %p173
      %p175 = scmp.ne.s32.totalorder %s163, %s164
      %p176 = scmp.eq.s32.totalorder %s39, 1
      %p177 = por %p175, %p176
      %p179 = scmp.ne.s32.totalorder %s164, %s178
      %p180 = scmp.eq.s32.totalorder %s39, 0
      %p181 = por %p179, %p180
      %s183 = sadd.s32 %s182, 1
      %p186 = scmp.eq.s32.totalorder %s33, 1
      %p187 = scmp.ne.s32.totalorder %s182, %s184
      %p188 = scmp.eq.s32.totalorder %s33, 0
      %p189 = por %p187, %p188
      %p190 = scmp.ne.s32.totalorder %s182, %s184
      %p191 = scmp.eq.s32.totalorder %s38, 1
      %p192 = por %p190, %p191
      %p193 = scmp.ne.s32.totalorder %s184, %s185
      %p194 = scmp.eq.s32.totalorder %s38, 0
      %p195 = por %p193, %p194
      %p196 = scmp.ne.s32.totalorder %s184, %s185
      %p197 = scmp.eq.s32.totalorder %s39, 1
      %p198 = por %p196, %p197
      %p200 = scmp.ne.s32.totalorder %s185, %s199
      %p201 = scmp.eq.s32.totalorder %s39, 0
      %p202 = por %p200, %p201
      %s204 = sadd.s32 %s203, 1
      %p207 = scmp.eq.s32.totalorder %s33, 1
      %p208 = scmp.ne.s32.totalorder %s203, %s205
      %p209 = scmp.eq.s32.totalorder %s33, 0
      %p210 = por %p208, %p209
      %p211 = scmp.ne.s32.totalorder %s203, %s205
      %p212 = scmp.eq.s32.totalorder %s38, 1
      %p213 = por %p211, %p212
      %p214 = scmp.ne.s32.totalorder %s205, %s206
      %p215 = scmp.eq.s32.totalorder %s38, 0
      %p216 = por %p214, %p215
      %p217 = scmp.ne.s32.totalorder %s205, %s206
      %p218 = scmp.eq.s32.totalorder %s39, 1
      %p219 = por %p217, %p218
      %p221 = scmp.ne.s32.totalorder %s206, %s220
      %p222 = scmp.eq.s32.totalorder %s39, 0
      %p223 = por %p221, %p222
      %s225 = sadd.s32 %s224, 1
      %p228 = scmp.eq.s32.totalorder %s33, 1
      %p229 = scmp.ne.s32.totalorder %s224, %s226
      %p230 = scmp.eq.s32.totalorder %s33, 0
      %p231 = por %p229, %p230
      %p232 = scmp.ne.s32.totalorder %s224, %s226
      %p233 = scmp.eq.s32.totalorder %s38, 1
      %p234 = por %p232, %p233
      %p235 = scmp.ne.s32.totalorder %s226, %s227
      %p236 = scmp.eq.s32.totalorder %s38, 0
      %p237 = por %p235, %p236
      %p238 = scmp.ne.s32.totalorder %s226, %s227
      %p239 = scmp.eq.s32.totalorder %s39, 1
      %p240 = por %p238, %p239
      %p242 = scmp.ne.s32.totalorder %s227, %s241
      %p243 = scmp.eq.s32.totalorder %s39, 0
      %p244 = por %p242, %p243
      %s246 = sadd.s32 %s245, 1
      %p249 = scmp.eq.s32.totalorder %s33, 1
      %p250 = scmp.ne.s32.totalorder %s245, %s247
      %p251 = scmp.eq.s32.totalorder %s33, 0
      %p252 = por %p250, %p251
      %p253 = scmp.ne.s32.totalorder %s245, %s247
      %p254 = scmp.eq.s32.totalorder %s38, 1
      %p255 = por %p253, %p254
      %p256 = scmp.ne.s32.totalorder %s247, %s248
      %p257 = scmp.eq.s32.totalorder %s38, 0
      %p258 = por %p256, %p257
      %p259 = scmp.ne.s32.totalorder %s247, %s248
      %p260 = scmp.eq.s32.totalorder %s39, 1
      %p261 = por %p259, %p260
      %p263 = scmp.ne.s32.totalorder %s248, %s262
      %p264 = scmp.eq.s32.totalorder %s39, 0
      %p265 = por %p263, %p264
      %s267 = sadd.s32 %s266, 1
      %p270 = scmp.eq.s32.totalorder %s33, 1
      %p271 = scmp.ne.s32.totalorder %s266, %s268
      %p272 = scmp.eq.s32.totalorder %s33, 0
      %p273 = por %p271, %p272
      %p274 = scmp.ne.s32.totalorder %s266, %s268
      %p275 = scmp.eq.s32.totalorder %s38, 1
      %p276 = por %p274, %p275
      %p277 = scmp.ne.s32.totalorder %s268, %s269
      %p278 = scmp.eq.s32.totalorder %s38, 0
      %p279 = por %p277, %p278
      %p280 = scmp.ne.s32.totalorder %s268, %s269
      %p281 = scmp.eq.s32.totalorder %s39, 1
      %p282 = por %p280, %p281
      %p284 = scmp.ne.s32.totalorder %s269, %s283
      %p285 = scmp.eq.s32.totalorder %s39, 0
      %p286 = por %p284, %p285
      %s288 = sadd.s32 %s287, 1
      %p291 = scmp.eq.s32.totalorder %s33, 1
      %p292 = scmp.ne.s32.totalorder %s287, %s289
      %p293 = scmp.eq.s32.totalorder %s33, 0
      %p294 = por %p292, %p293
      %p295 = scmp.ne.s32.totalorder %s287, %s289
      %p296 = scmp.eq.s32.totalorder %s38, 1
      %p297 = por %p295, %p296
      %p298 = scmp.ne.s32.totalorder %s289, %s290
      %p299 = scmp.eq.s32.totalorder %s38, 0
      %p300 = por %p298, %p299
      %p301 = scmp.ne.s32.totalorder %s289, %s290
      %p302 = scmp.eq.s32.totalorder %s39, 1
      %p303 = por %p301, %p302
      %p305 = scmp.ne.s32.totalorder %s290, %s304
      %p306 = scmp.eq.s32.totalorder %s39, 0
      %p307 = por %p305, %p306
      %s309 = sadd.s32 %s308, 1
      %p312 = scmp.eq.s32.totalorder %s33, 1
      %p313 = scmp.ne.s32.totalorder %s308, %s310
      %p314 = scmp.eq.s32.totalorder %s33, 0
      %p315 = por %p313, %p314
      %p316 = scmp.ne.s32.totalorder %s308, %s310
      %p317 = scmp.eq.s32.totalorder %s38, 1
      %p318 = por %p316, %p317
      %p319 = scmp.ne.s32.totalorder %s310, %s311
      %p320 = scmp.eq.s32.totalorder %s38, 0
      %p321 = por %p319, %p320
      %p322 = scmp.ne.s32.totalorder %s310, %s311
      %p323 = scmp.eq.s32.totalorder %s39, 1
      %p324 = por %p322, %p323
      %p326 = scmp.ne.s32.totalorder %s311, %s325
      %p327 = scmp.eq.s32.totalorder %s39, 0
      %p328 = por %p326, %p327
      %s330 = sadd.s32 %s329, 1
      %p333 = scmp.eq.s32.totalorder %s33, 1
      %p334 = scmp.ne.s32.totalorder %s329, %s331
      %p335 = scmp.eq.s32.totalorder %s33, 0
      %p336 = por %p334, %p335
      %p337 = scmp.ne.s32.totalorder %s329, %s331
      %p338 = scmp.eq.s32.totalorder %s38, 1
      %p339 = por %p337, %p338
      %p340 = scmp.ne.s32.totalorder %s331, %s332
      %p341 = scmp.eq.s32.totalorder %s38, 0
      %p342 = por %p340, %p341
      %p343 = scmp.ne.s32.totalorder %s331, %s332
      %p344 = scmp.eq.s32.totalorder %s39, 1
      %p345 = por %p343, %p344
      %p347 = scmp.ne.s32.totalorder %s332, %s346
      %p348 = scmp.eq.s32.totalorder %s39, 0
      %p349 = por %p347, %p348
      %s351 = sadd.s32 %s350, 1
      %p354 = scmp.eq.s32.totalorder %s33, 1
      %p355 = scmp.ne.s32.totalorder %s350, %s352
      %p356 = scmp.eq.s32.totalorder %s33, 0
      %p357 = por %p355, %p356
      %p358 = scmp.ne.s32.totalorder %s350, %s352
      %p359 = scmp.eq.s32.totalorder %s38, 1
      %p360 = por %p358, %p359
      %p361 = scmp.ne.s32.totalorder %s352, %s353
      %p362 = scmp.eq.s32.totalorder %s38, 0
      %p363 = por %p361, %p362
      %p364 = scmp.ne.s32.totalorder %s352, %s353
      %p365 = scmp.eq.s32.totalorder %s39, 1
      %p366 = por %p364, %p365
      %p368 = scmp.ne.s32.totalorder %s353, %s367
      %p369 = scmp.eq.s32.totalorder %s39, 0
      %p370 = por %p368, %p369
      %s371 = ssub.s32 %s33, %s40
      %p372 = scmp.eq.s32.totalorder %s371, 0
      %s374 = sadd.s32 %s373, 1
      %s375 = scalar_select %p372, %s373, %s374
      %p378 = pneg %p372
      %p379 = scmp.eq.s32.totalorder %s33, 1
      %p380 = por %p378, %p379
      %p381 = scmp.ne.s32.totalorder %s373, %s376
      %p382 = scmp.eq.s32.totalorder %s33, 0
      %p383 = por %p381, %p382
      %p384 = scmp.ne.s32.totalorder %s373, %s376
      %p385 = scmp.eq.s32.totalorder %s38, 1
      %p386 = por %p384, %p385
      %p387 = scmp.ne.s32.totalorder %s376, %s377
      %p388 = scmp.eq.s32.totalorder %s38, 0
      %p389 = por %p387, %p388
      %p390 = scmp.ne.s32.totalorder %s376, %s377
      %p391 = scmp.eq.s32.totalorder %s39, 1
      %p392 = por %p390, %p391
      %p394 = scmp.ne.s32.totalorder %s377, %s393
      %p395 = scmp.eq.s32.totalorder %s39, 0
      %p396 = por %p394, %p395
      %p397 = scmp.le.s32.totalorder 1, %s33
      %p398 = scmp.lt.s32.totalorder %s33, 3
      %p399 = pnand %p397, %p398
      %p400 = pneg %p399
      // Predicated region
      $region9: #{tpu_custom_call.1} parent=5 // pred_check
        _
      $region10: #{tpu_custom_call.1} parent=5 // pred_check_branch
        %402 = sbr.rel (%p399) target = $region12
      $region11: #{tpu_custom_call.1} parent=5 // pred_region
        %s403 = ssub.s32 %s33, 1
        // Predicated region
        $region13: #{tpu_custom_call.1} parent=11 // pred_check
          %p404 = pneg %p132
        $region14: #{tpu_custom_call.1} parent=11 // pred_check_branch
          %406 = sbr.rel (%p404) target = $region16
        $region15: #{tpu_custom_call.1} parent=11 // pred_region
          %408 = vsyncadd [#allocation9], 0
          %s409 = sshll.u32 %s3, 4
          %s410 = int_to_ptr.hbm [resolvable:$true] %s409
          %s411 = sshll.u32 [#allocation8], 4
          %s412 = int_to_ptr.vmem [resolvable:$true] %s411
          %417 = dma.hbm_to_vmem [thread:$0]  %s410, 512, %s412, [#allocation9], 128, 128, 8
        $region16: #{tpu_custom_call.1} parent=11 // pred_fallthru
          _
        // Predicated region
        $region17: #{tpu_custom_call.1} parent=11 // pred_check
          %p418 = pneg %p153
        $region18: #{tpu_custom_call.1} parent=11 // pred_check_branch
          %420 = sbr.rel (%p418) target = $region20
        $region19: #{tpu_custom_call.1} parent=11 // pred_region
          _
        $region20: #{tpu_custom_call.1} parent=11 // pred_fallthru
          _
        // Predicated region
        $region21: #{tpu_custom_call.1} parent=11 // pred_check
          %p421 = pneg %p174
        $region22: #{tpu_custom_call.1} parent=11 // pred_check_branch
          %423 = sbr.rel (%p421) target = $region24
        $region23: #{tpu_custom_call.1} parent=11 // pred_region
          %425 = vsyncadd [#allocation9], 0
          %s426 = sshll.u32 %s5, 4
          %s427 = int_to_ptr.hbm [resolvable:$true] %s426
          %s428 = sshll.u32 [#allocation10], 4
          %s429 = int_to_ptr.vmem [resolvable:$true] %s428
          %434 = dma.hbm_to_vmem [thread:$0]  %s427, 512, %s429, [#allocation9], 128, 128, 8
        $region24: #{tpu_custom_call.1} parent=11 // pred_fallthru
          _
        // Predicated region
        $region25: #{tpu_custom_call.1} parent=11 // pred_check
          %p435 = pneg %p195
        $region26: #{tpu_custom_call.1} parent=11 // pred_check_branch
          %437 = sbr.rel (%p435) target = $region28
        $region27: #{tpu_custom_call.1} parent=11 // pred_region
          _
        $region28: #{tpu_custom_call.1} parent=11 // pred_fallthru
          _
        // Predicated region
        $region29: #{tpu_custom_call.1} parent=11 // pred_check
          %p438 = pneg %p216
        $region30: #{tpu_custom_call.1} parent=11 // pred_check_branch
          %440 = sbr.rel (%p438) target = $region32
        $region31: #{tpu_custom_call.1} parent=11 // pred_region
          %442 = vsyncadd [#allocation12], 0
          %s443 = sshll.u32 %s7, 4
          %s444 = int_to_ptr.hbm [resolvable:$true] %s443
          %s445 = sshll.u32 [#allocation11], 4
          %s446 = int_to_ptr.vmem [resolvable:$true] %s445
          %451 = dma.hbm_to_vmem [thread:$0]  %s444, 512, %s446, [#allocation12], 128, 128, 8
        $region32: #{tpu_custom_call.1} parent=11 // pred_fallthru
          _
        // Predicated region
        $region33: #{tpu_custom_call.1} parent=11 // pred_check
          %p452 = pneg %p237
        $region34: #{tpu_custom_call.1} parent=11 // pred_check_branch
          %454 = sbr.rel (%p452) target = $region36
        $region35: #{tpu_custom_call.1} parent=11 // pred_region
          _
        $region36: #{tpu_custom_call.1} parent=11 // pred_fallthru
          _
        // Predicated region
        $region37: #{tpu_custom_call.1} parent=11 // pred_check
          %p455 = pneg %p258
        $region38: #{tpu_custom_call.1} parent=11 // pred_check_branch
          %457 = sbr.rel (%p455) target = $region40
        $region39: #{tpu_custom_call.1} parent=11 // pred_region
          %459 = vsyncadd [#allocation12], 0
          %s460 = sshll.u32 %s9, 4
          %s461 = int_to_ptr.hbm [resolvable:$true] %s460
          %s462 = sshll.u32 [#allocation13], 4
          %s463 = int_to_ptr.vmem [resolvable:$true] %s462
          %468 = dma.hbm_to_vmem [thread:$0]  %s461, 512, %s463, [#allocation12], 128, 128, 8
        $region40: #{tpu_custom_call.1} parent=11 // pred_fallthru
          _
        // Predicated region
        $region41: #{tpu_custom_call.1} parent=11 // pred_check
          %p469 = pneg %p279
        $region42: #{tpu_custom_call.1} parent=11 // pred_check_branch
          %471 = sbr.rel (%p469) target = $region44
        $region43: #{tpu_custom_call.1} parent=11 // pred_region
          _
        $region44: #{tpu_custom_call.1} parent=11 // pred_fallthru
          _
        // Predicated region
        $region45: #{tpu_custom_call.1} parent=11 // pred_check
          %p472 = pneg %p300
        $region46: #{tpu_custom_call.1} parent=11 // pred_check_branch
          %474 = sbr.rel (%p472) target = $region48
        $region47: #{tpu_custom_call.1} parent=11 // pred_region
          %476 = vsyncadd [#allocation15], 0
          %s477 = sshll.u32 %s11, 4
          %s478 = int_to_ptr.hbm [resolvable:$true] %s477
          %s479 = sshll.u32 [#allocation14], 4
          %s480 = int_to_ptr.vmem [resolvable:$true] %s479
          %485 = dma.hbm_to_vmem [thread:$0]  %s478, 512, %s480, [#allocation15], 128, 128, 8
        $region48: #{tpu_custom_call.1} parent=11 // pred_fallthru
          _
        // Predicated region
        $region49: #{tpu_custom_call.1} parent=11 // pred_check
          %p486 = pneg %p321
        $region50: #{tpu_custom_call.1} parent=11 // pred_check_branch
          %488 = sbr.rel (%p486) target = $region52
        $region51: #{tpu_custom_call.1} parent=11 // pred_region
          _
        $region52: #{tpu_custom_call.1} parent=11 // pred_fallthru
          _
        // Predicated region
        $region53: #{tpu_custom_call.1} parent=11 // pred_check
          %p489 = pneg %p342
        $region54: #{tpu_custom_call.1} parent=11 // pred_check_branch
          %491 = sbr.rel (%p489) target = $region56
        $region55: #{tpu_custom_call.1} parent=11 // pred_region
          %493 = vsyncadd [#allocation15], 0
          %s494 = sshll.u32 %s13, 4
          %s495 = int_to_ptr.hbm [resolvable:$true] %s494
          %s496 = sshll.u32 [#allocation16], 4
          %s497 = int_to_ptr.vmem [resolvable:$true] %s496
          %502 = dma.hbm_to_vmem [thread:$0]  %s495, 512, %s497, [#allocation15], 128, 128, 8
        $region56: #{tpu_custom_call.1} parent=11 // pred_fallthru
          _
        // Predicated region
        $region57: #{tpu_custom_call.1} parent=11 // pred_check
          %p503 = pneg %p363
        $region58: #{tpu_custom_call.1} parent=11 // pred_check_branch
          %505 = sbr.rel (%p503) target = $region60
        $region59: #{tpu_custom_call.1} parent=11 // pred_region
          _
        $region60: #{tpu_custom_call.1} parent=11 // pred_fallthru
          _
      $region12: #{tpu_custom_call.1} parent=5 // pred_fallthru
        _
      %p506 = scmp.lt.s32.totalorder %s33, 2
      // Predicated region
      $region61: #{tpu_custom_call.1} parent=5 // pred_check
        %p507 = pneg %p506
      $region62: #{tpu_custom_call.1} parent=5 // pred_check_branch
        %509 = sbr.rel (%p507) target = $region64
      $region63: #{tpu_custom_call.1} parent=5 // pred_region
        // Predicated region
        $region65: #{tpu_custom_call.1} parent=63 // pred_check
          %p510 = pneg %p53
        $region66: #{tpu_custom_call.1} parent=63 // pred_check_branch
          %512 = sbr.rel (%p510) target = $region68
        $region67: #{tpu_custom_call.1} parent=63 // pred_region
          %s513 = sand.u32 %s43, 1
          %s514 = scalar_lea.sflag [#allocation3], %s513
          %s515 = sand.u32 %s43, 1
          %s516 = smul.addr %s515, 8
          %s517 = scalar_lea.vmem [#allocation2], %s516
          %519 = vsyncadd %s514, 0
          %s520 = smul.addr %s33, 8
          %s521 = scalar_lea.hbm %s0, %s520
          %s523 = sshll.u32 %s521, 4
          %s524 = int_to_ptr.hbm [resolvable:$true] %s523
          %s525 = sshll.u32 %s517, 4
          %s526 = int_to_ptr.vmem [resolvable:$true] %s525
          %528 = dma.hbm_to_vmem [thread:$0]  %s524, 128, %s526, %s514
        $region68: #{tpu_custom_call.1} parent=63 // pred_fallthru
          _
        // Predicated region
        $region69: #{tpu_custom_call.1} parent=63 // pred_check
          %p529 = pneg %p79
        $region70: #{tpu_custom_call.1} parent=63 // pred_check_branch
          %531 = sbr.rel (%p529) target = $region72
        $region71: #{tpu_custom_call.1} parent=63 // pred_region
          %s532 = sand.u32 %s33, 1
          %s533 = scalar_lea.sflag [#allocation6], %s532
          %s534 = sand.u32 %s69, 1
          %s535 = smul.addr %s534, 8
          %s536 = scalar_lea.vmem [#allocation5], %s535
          %538 = vsyncadd %s533, 0
          %s539 = smul.addr %s33, 8
          %s540 = scalar_lea.hbm %s1, %s539
          %s542 = sshll.u32 %s540, 4
          %s543 = int_to_ptr.hbm [resolvable:$true] %s542
          %s544 = sshll.u32 %s536, 4
          %s545 = int_to_ptr.vmem [resolvable:$true] %s544
          %547 = dma.hbm_to_vmem [thread:$0]  %s543, 128, %s545, %s533
        $region72: #{tpu_custom_call.1} parent=63 // pred_fallthru
          _
        // Predicated region
        $region73: #{tpu_custom_call.1} parent=63 // pred_check
          %p548 = pneg %p105
        $region74: #{tpu_custom_call.1} parent=63 // pred_check_branch
          %550 = sbr.rel (%p548) target = $region76
        $region75: #{tpu_custom_call.1} parent=63 // pred_region
          %s551 = sand.u32 %s33, 1
          %s552 = scalar_lea.sflag [#allocation6], %s551
          %s553 = sand.u32 %s95, 1
          %s554 = smul.addr %s553, 8
          %s555 = scalar_lea.vmem [#allocation7], %s554
          %557 = vsyncadd %s552, 0
          %s558 = smul.addr %s33, 8
          %s559 = scalar_lea.hbm %s2, %s558
          %s561 = sshll.u32 %s559, 4
          %s562 = int_to_ptr.hbm [resolvable:$true] %s561
          %s563 = sshll.u32 %s555, 4
          %s564 = int_to_ptr.vmem [resolvable:$true] %s563
          %566 = dma.hbm_to_vmem [thread:$0]  %s562, 128, %s564, %s552
        $region76: #{tpu_custom_call.1} parent=63 // pred_fallthru
          _
      $region64: #{tpu_custom_call.1} parent=5 // pred_fallthru
        _
      %p567 = scmp.le.s32.totalorder 1, %s33
      %p568 = scmp.lt.s32.totalorder %s33, 3
      %p569 = pnand %p567, %p568
      %p570 = pneg %p569
      // Predicated region
      $region77: #{tpu_custom_call.1} parent=5 // pred_check
        _
      $region78: #{tpu_custom_call.1} parent=5 // pred_check_branch
        %572 = sbr.rel (%p569) target = $region80
      $region79: #{tpu_custom_call.1} parent=5 // pred_region
        %s573 = ssub.s32 %s33, 1
        %s574 = sand.u32 %s46, 1
        %s575 = scalar_lea.sflag [#allocation3], %s574
        %s576 = sand.u32 %s46, 1
        %s577 = smul.addr %s576, 8
        %s578 = scalar_lea.vmem [#allocation2], %s577
        // Predicated region
        $region81: #{tpu_custom_call.1} parent=79 // pred_check
          %p579 = pneg %p59
        $region82: #{tpu_custom_call.1} parent=79 // pred_check_branch
          %581 = sbr.rel (%p579) target = $region84
        $region83: #{tpu_custom_call.1} parent=79 // pred_region
          %583 = dma.done %s575, 128
        $region84: #{tpu_custom_call.1} parent=79 // pred_fallthru
          _
        %s584 = sand.u32 %s38, 1
        %s585 = scalar_lea.sflag [#allocation6], %s584
        %s586 = sand.u32 %s72, 1
        %s587 = smul.addr %s586, 8
        %s588 = scalar_lea.vmem [#allocation5], %s587
        // Predicated region
        $region85: #{tpu_custom_call.1} parent=79 // pred_check
          %p589 = pneg %p85
        $region86: #{tpu_custom_call.1} parent=79 // pred_check_branch
          %591 = sbr.rel (%p589) target = $region88
        $region87: #{tpu_custom_call.1} parent=79 // pred_region
          %593 = dma.done %s585, 128
        $region88: #{tpu_custom_call.1} parent=79 // pred_fallthru
          _
        %s594 = sand.u32 %s38, 1
        %s595 = scalar_lea.sflag [#allocation6], %s594
        %s596 = sand.u32 %s98, 1
        %s597 = smul.addr %s596, 8
        %s598 = scalar_lea.vmem [#allocation7], %s597
        // Predicated region
        $region89: #{tpu_custom_call.1} parent=79 // pred_check
          %p599 = pneg %p111
        $region90: #{tpu_custom_call.1} parent=79 // pred_check_branch
          %601 = sbr.rel (%p599) target = $region92
        $region91: #{tpu_custom_call.1} parent=79 // pred_region
          %603 = dma.done %s595, 128
        $region92: #{tpu_custom_call.1} parent=79 // pred_fallthru
          _
        // Predicated region
        $region93: #{tpu_custom_call.1} parent=79 // pred_check
          %p604 = pneg %p132
        $region94: #{tpu_custom_call.1} parent=79 // pred_check_branch
          %606 = sbr.rel (%p604) target = $region96
        $region95: #{tpu_custom_call.1} parent=79 // pred_region
          %608 = dma.done [#allocation9], 512
        $region96: #{tpu_custom_call.1} parent=79 // pred_fallthru
          _
        // Predicated region
        $region97: #{tpu_custom_call.1} parent=79 // pred_check
          %p609 = pneg %p174
        $region98: #{tpu_custom_call.1} parent=79 // pred_check_branch
          %611 = sbr.rel (%p609) target = $region100
        $region99: #{tpu_custom_call.1} parent=79 // pred_region
          %613 = dma.done [#allocation9], 512
        $region100: #{tpu_custom_call.1} parent=79 // pred_fallthru
          _
        // Predicated region
        $region101: #{tpu_custom_call.1} parent=79 // pred_check
          %p614 = pneg %p216
        $region102: #{tpu_custom_call.1} parent=79 // pred_check_branch
          %616 = sbr.rel (%p614) target = $region104
        $region103: #{tpu_custom_call.1} parent=79 // pred_region
          %618 = dma.done [#allocation12], 512
        $region104: #{tpu_custom_call.1} parent=79 // pred_fallthru
          _
        // Predicated region
        $region105: #{tpu_custom_call.1} parent=79 // pred_check
          %p619 = pneg %p258
        $region106: #{tpu_custom_call.1} parent=79 // pred_check_branch
          %621 = sbr.rel (%p619) target = $region108
        $region107: #{tpu_custom_call.1} parent=79 // pred_region
          %623 = dma.done [#allocation12], 512
        $region108: #{tpu_custom_call.1} parent=79 // pred_fallthru
          _
        // Predicated region
        $region109: #{tpu_custom_call.1} parent=79 // pred_check
          %p624 = pneg %p300
        $region110: #{tpu_custom_call.1} parent=79 // pred_check_branch
          %626 = sbr.rel (%p624) target = $region112
        $region111: #{tpu_custom_call.1} parent=79 // pred_region
          %628 = dma.done [#allocation15], 512
        $region112: #{tpu_custom_call.1} parent=79 // pred_fallthru
          _
        // Predicated region
        $region113: #{tpu_custom_call.1} parent=79 // pred_check
          %p629 = pneg %p342
        $region114: #{tpu_custom_call.1} parent=79 // pred_check_branch
          %631 = sbr.rel (%p629) target = $region116
        $region115: #{tpu_custom_call.1} parent=79 // pred_region
          %633 = dma.done [#allocation15], 512
        $region116: #{tpu_custom_call.1} parent=79 // pred_fallthru
          _
        %s634 = sand.u32 %s46, 1
        %s635 = scalar_lea.sflag [#allocation3], %s634
        %s636 = sand.u32 %s46, 1
        %s637 = smul.addr %s636, 8
        %s638 = scalar_lea.vmem [#allocation2], %s637
        %p639 = pneg %p59
        %p640 = pneg %p56
        %s641 = sand.u32 %s38, 1
        %s642 = scalar_lea.sflag [#allocation6], %s641
        %s643 = sand.u32 %s72, 1
        %s644 = smul.addr %s643, 8
        %s645 = scalar_lea.vmem [#allocation5], %s644
        %p646 = pneg %p85
        %p647 = pneg %p82
        %s648 = sand.u32 %s38, 1
        %s649 = scalar_lea.sflag [#allocation6], %s648
        %s650 = sand.u32 %s98, 1
        %s651 = smul.addr %s650, 8
        %s652 = scalar_lea.vmem [#allocation7], %s651
        %p653 = pneg %p111
        %p654 = pneg %p108
        %p655 = pneg %p132
        %p656 = pneg %p129
        %p657 = pneg %p153
        %p658 = pneg %p150
        %p659 = pneg %p174
        %p660 = pneg %p171
        %p661 = pneg %p195
        %p662 = pneg %p192
        %p663 = pneg %p216
        %p664 = pneg %p213
        %p665 = pneg %p237
        %p666 = pneg %p234
        %p667 = pneg %p258
        %p668 = pneg %p255
        %p669 = pneg %p279
        %p670 = pneg %p276
        %p671 = pneg %p300
        %p672 = pneg %p297
        %p673 = pneg %p321
        %p674 = pneg %p318
        %p675 = pneg %p342
        %p676 = pneg %p339
        %p677 = pneg %p363
        %p678 = pneg %p360
        %p679 = pneg %p389
        %p680 = pneg %p386
        %s681 = sand.u32 %s376, 1
        %s682 = scalar_lea.sflag [#allocation4], %s681
        %s683 = sand.u32 %s376, 1
        %s684 = smul.addr %s683, 8
        %s685 = scalar_lea.vmem [#allocation17], %s684
        %v686 = vld [vmem:[%s578] sm:$0xff]
        %v687 = vld [vmem:[%s588] sm:$0xff]
        %v688 = vld [vmem:[%s598] sm:$0xff]
        %v689 = vld [vmem:[#allocation8] sm:$0xff]
        %v690 = vld [vmem:[#allocation8 + $0x8] sm:$0xff]
        %v691 = vld [vmem:[#allocation8 + $0x10] sm:$0xff]
        %v692 = vld [vmem:[#allocation8 + $0x18] sm:$0xff]
        %v693 = vld [vmem:[%s4] sm:$0x1]
        %v695 = vperm.slane %v693, 0
        %vm697 = vcmask 261120
        %v699 = vsel %vm697, %v686, 0
        %701 = vmatpush.msra.mxu0 0.0
        %702 = vmatpush.msra.mxu0 0.0
        %703 = vmatpush.msra.mxu0 0.0
        %704 = vmatpush.msra.mxu0 0.0
        %705 = vmatpush.msra.mxu0 0.0
        %706 = vmatpush.msra.mxu0 0.0
        %707 = vmatpush.msra.mxu0 0.0
        %708 = vmatpush.msra.mxu0 0.0
        %709 = vmatpush.msra.mxu0 0.0
        %710 = vmatpush.msra.mxu0 0.0
        %711 = vmatpush.msra.mxu0 0.0
        %712 = vmatpush.msra.mxu0 0.0
        %713 = vmatpush.msra.mxu0 %v692
        %714 = vmatpush.msra.mxu0 %v691
        %715 = vmatpush.msra.mxu0 %v690
        %716 = vmatpush.msra.mxu0 %v689
        %717 = vmatmul.f32.gmra.mxu0 %v699
        %v718 = vpop.f32.mrf.mxu0
        %v719 = vadd.f32 %v695, %v718
        %720 = vdwg.mxu0
        %v721 = vld [vmem:[#allocation10] sm:$0xff]
        %v722 = vld [vmem:[#allocation10 + $0x8] sm:$0xff]
        %v723 = vld [vmem:[#allocation10 + $0x10] sm:$0xff]
        %v724 = vld [vmem:[#allocation10 + $0x18] sm:$0xff]
        %v725 = vld [vmem:[%s6] sm:$0x1]
        %v727 = vperm.slane %v725, 0
        %v730 = vsel %vm697, %v687, 0
        %732 = vmatpush.msra.mxu0 0.0
        %733 = vmatpush.msra.mxu0 0.0
        %734 = vmatpush.msra.mxu0 0.0
        %735 = vmatpush.msra.mxu0 0.0
        %736 = vmatpush.msra.mxu0 0.0
        %737 = vmatpush.msra.mxu0 0.0
        %738 = vmatpush.msra.mxu0 0.0
        %739 = vmatpush.msra.mxu0 0.0
        %740 = vmatpush.msra.mxu0 0.0
        %741 = vmatpush.msra.mxu0 0.0
        %742 = vmatpush.msra.mxu0 0.0
        %743 = vmatpush.msra.mxu0 0.0
        %744 = vmatpush.msra.mxu0 %v724
        %745 = vmatpush.msra.mxu0 %v723
        %746 = vmatpush.msra.mxu0 %v722
        %747 = vmatpush.msra.mxu0 %v721
        %748 = vmatmul.f32.gmra.mxu0 %v730
        %v749 = vpop.f32.mrf.mxu0
        %v750 = vadd.f32 %v727, %v749
        %751 = vdwg.mxu0
        %v752 = vld [vmem:[#allocation11] sm:$0xff]
        %v753 = vld [vmem:[#allocation11 + $0x8] sm:$0xff]
        %v754 = vld [vmem:[#allocation11 + $0x10] sm:$0xff]
        %v755 = vld [vmem:[#allocation11 + $0x18] sm:$0xff]
        %v756 = vld [vmem:[%s8] sm:$0x1]
        %v758 = vperm.slane %v756, 0
        %v761 = vsel %vm697, %v688, 0
        %763 = vmatpush.msra.mxu0 0.0
        %764 = vmatpush.msra.mxu0 0.0
        %765 = vmatpush.msra.mxu0 0.0
        %766 = vmatpush.msra.mxu0 0.0
        %767 = vmatpush.msra.mxu0 0.0
        %768 = vmatpush.msra.mxu0 0.0
        %769 = vmatpush.msra.mxu0 0.0
        %770 = vmatpush.msra.mxu0 0.0
        %771 = vmatpush.msra.mxu0 0.0
        %772 = vmatpush.msra.mxu0 0.0
        %773 = vmatpush.msra.mxu0 0.0
        %774 = vmatpush.msra.mxu0 0.0
        %775 = vmatpush.msra.mxu0 %v755
        %776 = vmatpush.msra.mxu0 %v754
        %777 = vmatpush.msra.mxu0 %v753
        %778 = vmatpush.msra.mxu0 %v752
        %779 = vmatmul.f32.gmra.mxu0 %v761
        %v780 = vpop.f32.mrf.mxu0
        %v781 = vadd.f32 %v758, %v780
        %782 = vdwg.mxu0
        %v783 = vld [vmem:[%s10] sm:$0x1]
        %v785 = vperm.slane %v783, 0
        %vm787 = vcmask 64512
        %v789 = vsel %vm787, %v719, 0
        %v792 = vsel %vm787, %v750, 0
        %794 = vmatpush.xpose.msra.mxu0 0.0
        %795 = vmatpush.xpose.msra.mxu0 0.0
        %796 = vmatpush.xpose.msra.mxu0 0.0
        %797 = vmatpush.xpose.msra.mxu0 0.0
        %798 = vmatpush.xpose.msra.mxu0 0.0
        %799 = vmatpush.xpose.msra.mxu0 0.0
        %800 = vmatpush.xpose.msra.mxu0 0.0
        %801 = vmatpush.xpose.msra.mxu0 0.0
        %802 = vmatpush.xpose.msra.mxu0 0.0
        %803 = vmatpush.xpose.msra.mxu0 0.0
        %804 = vmatpush.xpose.msra.mxu0 0.0
        %805 = vmatpush.xpose.msra.mxu0 0.0
        %806 = vmatpush.xpose.msra.mxu0 0.0
        %807 = vmatpush.xpose.msra.mxu0 0.0
        %808 = vmatpush.xpose.msra.mxu0 0.0
        %809 = vmatpush.xpose.msra.mxu0 %v792
        %810 = vmatmul.f32.gmra.mxu0 %v789
        %v811 = vpop.f32.mrf.mxu0
        %v812 = vadd.f32 0.0, %v811
        %813 = vdwg.mxu0
        %v814 = vmul.f32 %v812, 0.35355338
        %v815 = vsel %vm787, %v814, -inf
        %816 = vmax.xlane.f32.xlu0 %v815
        %v817 = vpop.xlane.xlu0 %816
        %v818 = vsub.f32 %v814, %v817
        %v819 = vmul.f32 %v818, 1.442695
        %v820 = vpow.pop %v819
        %v821 = vsel %vm787, %v820, 0.0
        %822 = vadd.xlane.f32.xlu0 %v821
        %v823 = vpop.xlane.xlu0 %822
        %v824 = vrcp.pop %v823
        %v825 = vmul.f32 %v823, %v824
        %v826 = vsub.f32 1.0, %v825
        %v827 = vmul.f32 %v824, %v826
        %v828 = vadd.f32 %v824, %v827
        %vm829 = vweird.f32 %v823
        %vm830 = vweird.f32 %v824
        %vm831 = vmor %vm829, %vm830
        %v832 = vsel %vm831, %v824, %v828
        %v833 = vand.u32 2147483647, %v823
        %vm834 = vcmp.eq.f32.partialorder %v833, 8.507059e+37
        %v835 = vand.u32 %v823, 2147483648
        %v836 = vor.u32 1.1754944e-38, %v835
        %v837 = vsel %vm834, %v836, %v832
        %v838 = vmul.f32 %v820, %v837
        %v840 = vsel %vm787, %v838, 0
        %842 = vmatpush.msra.mxu0 0.0
        %843 = vmatpush.msra.mxu0 0.0
        %844 = vmatpush.msra.mxu0 0.0
        %845 = vmatpush.msra.mxu0 0.0
        %846 = vmatpush.msra.mxu0 0.0
        %847 = vmatpush.msra.mxu0 0.0
        %848 = vmatpush.msra.mxu0 0.0
        %849 = vmatpush.msra.mxu0 0.0
        %850 = vmatpush.msra.mxu0 0.0
        %851 = vmatpush.msra.mxu0 0.0
        %852 = vmatpush.msra.mxu0 0.0
        %853 = vmatpush.msra.mxu0 0.0
        %854 = vmatpush.msra.mxu0 0.0
        %855 = vmatpush.msra.mxu0 0.0
        %856 = vmatpush.msra.mxu0 0.0
        %857 = vmatpush.msra.mxu0 %v781
        %858 = vmatmul.f32.gmra.mxu0 %v840
        %v859 = vpop.f32.mrf.mxu0
        %v860 = vadd.f32 0.0, %v859
        %861 = vdwg.mxu0
        %v862 = vld [vmem:[#allocation13] sm:$0xff]
        %v864 = vsel %vm787, %v860, 0
        %866 = vmatpush.msra.mxu0 0.0
        %867 = vmatpush.msra.mxu0 0.0
        %868 = vmatpush.msra.mxu0 0.0
        %869 = vmatpush.msra.mxu0 0.0
        %870 = vmatpush.msra.mxu0 0.0
        %871 = vmatpush.msra.mxu0 0.0
        %872 = vmatpush.msra.mxu0 0.0
        %873 = vmatpush.msra.mxu0 0.0
        %874 = vmatpush.msra.mxu0 0.0
        %875 = vmatpush.msra.mxu0 0.0
        %876 = vmatpush.msra.mxu0 0.0
        %877 = vmatpush.msra.mxu0 0.0
        %878 = vmatpush.msra.mxu0 0.0
        %879 = vmatpush.msra.mxu0 0.0
        %880 = vmatpush.msra.mxu0 0.0
        %881 = vmatpush.msra.mxu0 %v862
        %882 = vmatmul.f32.gmra.mxu0 %v864
        %v883 = vpop.f32.mrf.mxu0
        %v884 = vadd.f32 0.0, %v883
        %885 = vdwg.mxu0
        %v886 = vadd.f32 %v785, %v884
        %887 = vrot.lane.b32.xlu0 %v719, 120
        %v888 = vpop.permute.xlu0 %887
        %889 = vrot.lane.b32.xlu0 %v750, 120
        %v890 = vpop.permute.xlu0 %889
        %v891 = vsel %vm787, %v888, 0
        %v893 = vsel %vm787, %v890, 0
        %895 = vmatpush.xpose.msra.mxu0 0.0
        %896 = vmatpush.xpose.msra.mxu0 0.0
        %897 = vmatpush.xpose.msra.mxu0 0.0
        %898 = vmatpush.xpose.msra.mxu0 0.0
        %899 = vmatpush.xpose.msra.mxu0 0.0
        %900 = vmatpush.xpose.msra.mxu0 0.0
        %901 = vmatpush.xpose.msra.mxu0 0.0
        %902 = vmatpush.xpose.msra.mxu0 0.0
        %903 = vmatpush.xpose.msra.mxu0 0.0
        %904 = vmatpush.xpose.msra.mxu0 0.0
        %905 = vmatpush.xpose.msra.mxu0 0.0
        %906 = vmatpush.xpose.msra.mxu0 0.0
        %907 = vmatpush.xpose.msra.mxu0 0.0
        %908 = vmatpush.xpose.msra.mxu0 0.0
        %909 = vmatpush.xpose.msra.mxu0 0.0
        %910 = vmatpush.xpose.msra.mxu0 %v893
        %911 = vmatmul.f32.gmra.mxu0 %v891
        %v912 = vpop.f32.mrf.mxu0
        %v913 = vadd.f32 0.0, %v912
        %914 = vdwg.mxu0
        %v915 = vmul.f32 %v913, 0.35355338
        %v916 = vsel %vm787, %v915, -inf
        %917 = vmax.xlane.f32.xlu0 %v916
        %v918 = vpop.xlane.xlu0 %917
        %v919 = vsub.f32 %v915, %v918
        %v920 = vmul.f32 %v919, 1.442695
        %v921 = vpow.pop %v920
        %v922 = vsel %vm787, %v921, 0.0
        %923 = vadd.xlane.f32.xlu0 %v922
        %v924 = vpop.xlane.xlu0 %923
        %v925 = vrcp.pop %v924
        %v926 = vmul.f32 %v924, %v925
        %v927 = vsub.f32 1.0, %v926
        %v928 = vmul.f32 %v925, %v927
        %v929 = vadd.f32 %v925, %v928
        %vm930 = vweird.f32 %v924
        %vm931 = vweird.f32 %v925
        %vm932 = vmor %vm930, %vm931
        %v933 = vsel %vm932, %v925, %v929
        %v934 = vand.u32 2147483647, %v924
        %vm935 = vcmp.eq.f32.partialorder %v934, 8.507059e+37
        %v936 = vand.u32 %v924, 2147483648
        %v937 = vor.u32 1.1754944e-38, %v936
        %v938 = vsel %vm935, %v937, %v933
        %v939 = vmul.f32 %v921, %v938
        %941 = vrot.lane.b32.xlu0 %v781, 120
        %v942 = vpop.permute.xlu0 %941
        %v945 = vsel %vm787, %v939, 0
        %947 = vmatpush.msra.mxu0 0.0
        %948 = vmatpush.msra.mxu0 0.0
        %949 = vmatpush.msra.mxu0 0.0
        %950 = vmatpush.msra.mxu0 0.0
        %951 = vmatpush.msra.mxu0 0.0
        %952 = vmatpush.msra.mxu0 0.0
        %953 = vmatpush.msra.mxu0 0.0
        %954 = vmatpush.msra.mxu0 0.0
        %955 = vmatpush.msra.mxu0 0.0
        %956 = vmatpush.msra.mxu0 0.0
        %957 = vmatpush.msra.mxu0 0.0
        %958 = vmatpush.msra.mxu0 0.0
        %959 = vmatpush.msra.mxu0 0.0
        %960 = vmatpush.msra.mxu0 0.0
        %961 = vmatpush.msra.mxu0 0.0
        %962 = vmatpush.msra.mxu0 %v942
        %963 = vmatmul.f32.gmra.mxu0 %v945
        %v964 = vpop.f32.mrf.mxu0
        %v965 = vadd.f32 0.0, %v964
        %966 = vdwg.mxu0
        %v967 = vld [vmem:[#allocation13 + $0x8] sm:$0xff]
        %v969 = vsel %vm787, %v965, 0
        %971 = vmatpush.msra.mxu0 0.0
        %972 = vmatpush.msra.mxu0 0.0
        %973 = vmatpush.msra.mxu0 0.0
        %974 = vmatpush.msra.mxu0 0.0
        %975 = vmatpush.msra.mxu0 0.0
        %976 = vmatpush.msra.mxu0 0.0
        %977 = vmatpush.msra.mxu0 0.0
        %978 = vmatpush.msra.mxu0 0.0
        %979 = vmatpush.msra.mxu0 0.0
        %980 = vmatpush.msra.mxu0 0.0
        %981 = vmatpush.msra.mxu0 0.0
        %982 = vmatpush.msra.mxu0 0.0
        %983 = vmatpush.msra.mxu0 0.0
        %984 = vmatpush.msra.mxu0 0.0
        %985 = vmatpush.msra.mxu0 0.0
        %986 = vmatpush.msra.mxu0 %v967
        %987 = vmatmul.f32.gmra.mxu0 %v969
        %v988 = vpop.f32.mrf.mxu0
        %v989 = vadd.f32 0.0, %v988
        %990 = vdwg.mxu0
        %v991 = vadd.f32 %v886, %v989
        %992 = vrot.lane.b32.xlu0 %v719, 112
        %v993 = vpop.permute.xlu0 %992
        %994 = vrot.lane.b32.xlu0 %v750, 112
        %v995 = vpop.permute.xlu0 %994
        %v996 = vsel %vm787, %v993, 0
        %v998 = vsel %vm787, %v995, 0
        %1000 = vmatpush.xpose.msra.mxu0 0.0
        %1001 = vmatpush.xpose.msra.mxu0 0.0
        %1002 = vmatpush.xpose.msra.mxu0 0.0
        %1003 = vmatpush.xpose.msra.mxu0 0.0
        %1004 = vmatpush.xpose.msra.mxu0 0.0
        %1005 = vmatpush.xpose.msra.mxu0 0.0
        %1006 = vmatpush.xpose.msra.mxu0 0.0
        %1007 = vmatpush.xpose.msra.mxu0 0.0
        %1008 = vmatpush.xpose.msra.mxu0 0.0
        %1009 = vmatpush.xpose.msra.mxu0 0.0
        %1010 = vmatpush.xpose.msra.mxu0 0.0
        %1011 = vmatpush.xpose.msra.mxu0 0.0
        %1012 = vmatpush.xpose.msra.mxu0 0.0
        %1013 = vmatpush.xpose.msra.mxu0 0.0
        %1014 = vmatpush.xpose.msra.mxu0 0.0
        %1015 = vmatpush.xpose.msra.mxu0 %v998
        %1016 = vmatmul.f32.gmra.mxu0 %v996
        %v1017 = vpop.f32.mrf.mxu0
        %v1018 = vadd.f32 0.0, %v1017
        %1019 = vdwg.mxu0
        %v1020 = vmul.f32 %v1018, 0.35355338
        %v1021 = vsel %vm787, %v1020, -inf
        %1022 = vmax.xlane.f32.xlu0 %v1021
        %v1023 = vpop.xlane.xlu0 %1022
        %v1024 = vsub.f32 %v1020, %v1023
        %v1025 = vmul.f32 %v1024, 1.442695
        %v1026 = vpow.pop %v1025
        %v1027 = vsel %vm787, %v1026, 0.0
        %1028 = vadd.xlane.f32.xlu0 %v1027
        %v1029 = vpop.xlane.xlu0 %1028
        %v1030 = vrcp.pop %v1029
        %v1031 = vmul.f32 %v1029, %v1030
        %v1032 = vsub.f32 1.0, %v1031
        %v1033 = vmul.f32 %v1030, %v1032
        %v1034 = vadd.f32 %v1030, %v1033
        %vm1035 = vweird.f32 %v1029
        %vm1036 = vweird.f32 %v1030
        %vm1037 = vmor %vm1035, %vm1036
        %v1038 = vsel %vm1037, %v1030, %v1034
        %v1039 = vand.u32 2147483647, %v1029
        %vm1040 = vcmp.eq.f32.partialorder %v1039, 8.507059e+37
        %v1041 = vand.u32 %v1029, 2147483648
        %v1042 = vor.u32 1.1754944e-38, %v1041
        %v1043 = vsel %vm1040, %v1042, %v1038
        %v1044 = vmul.f32 %v1026, %v1043
        %1045 = vrot.lane.b32.xlu0 %v781, 112
        %v1046 = vpop.permute.xlu0 %1045
        %v1049 = vsel %vm787, %v1044, 0
        %1051 = vmatpush.msra.mxu0 0.0
        %1052 = vmatpush.msra.mxu0 0.0
        %1053 = vmatpush.msra.mxu0 0.0
        %1054 = vmatpush.msra.mxu0 0.0
        %1055 = vmatpush.msra.mxu0 0.0
        %1056 = vmatpush.msra.mxu0 0.0
        %1057 = vmatpush.msra.mxu0 0.0
        %1058 = vmatpush.msra.mxu0 0.0
        %1059 = vmatpush.msra.mxu0 0.0
        %1060 = vmatpush.msra.mxu0 0.0
        %1061 = vmatpush.msra.mxu0 0.0
        %1062 = vmatpush.msra.mxu0 0.0
        %1063 = vmatpush.msra.mxu0 0.0
        %1064 = vmatpush.msra.mxu0 0.0
        %1065 = vmatpush.msra.mxu0 0.0
        %1066 = vmatpush.msra.mxu0 %v1046
        %1067 = vmatmul.f32.gmra.mxu0 %v1049
        %v1068 = vpop.f32.mrf.mxu0
        %v1069 = vadd.f32 0.0, %v1068
        %1070 = vdwg.mxu0
        %v1071 = vld [vmem:[#allocation13 + $0x10] sm:$0xff]
        %v1073 = vsel %vm787, %v1069, 0
        %1075 = vmatpush.msra.mxu0 0.0
        %1076 = vmatpush.msra.mxu0 0.0
        %1077 = vmatpush.msra.mxu0 0.0
        %1078 = vmatpush.msra.mxu0 0.0
        %1079 = vmatpush.msra.mxu0 0.0
        %1080 = vmatpush.msra.mxu0 0.0
        %1081 = vmatpush.msra.mxu0 0.0
        %1082 = vmatpush.msra.mxu0 0.0
        %1083 = vmatpush.msra.mxu0 0.0
        %1084 = vmatpush.msra.mxu0 0.0
        %1085 = vmatpush.msra.mxu0 0.0
        %1086 = vmatpush.msra.mxu0 0.0
        %1087 = vmatpush.msra.mxu0 0.0
        %1088 = vmatpush.msra.mxu0 0.0
        %1089 = vmatpush.msra.mxu0 0.0
        %1090 = vmatpush.msra.mxu0 %v1071
        %1091 = vmatmul.f32.gmra.mxu0 %v1073
        %v1092 = vpop.f32.mrf.mxu0
        %v1093 = vadd.f32 0.0, %v1092
        %1094 = vdwg.mxu0
        %v1095 = vadd.f32 %v991, %v1093
        %1096 = vrot.lane.b32.xlu0 %v719, 104
        %v1097 = vpop.permute.xlu0 %1096
        %1098 = vrot.lane.b32.xlu0 %v750, 104
        %v1099 = vpop.permute.xlu0 %1098
        %v1100 = vsel %vm787, %v1097, 0
        %v1102 = vsel %vm787, %v1099, 0
        %1104 = vmatpush.xpose.msra.mxu0 0.0
        %1105 = vmatpush.xpose.msra.mxu0 0.0
        %1106 = vmatpush.xpose.msra.mxu0 0.0
        %1107 = vmatpush.xpose.msra.mxu0 0.0
        %1108 = vmatpush.xpose.msra.mxu0 0.0
        %1109 = vmatpush.xpose.msra.mxu0 0.0
        %1110 = vmatpush.xpose.msra.mxu0 0.0
        %1111 = vmatpush.xpose.msra.mxu0 0.0
        %1112 = vmatpush.xpose.msra.mxu0 0.0
        %1113 = vmatpush.xpose.msra.mxu0 0.0
        %1114 = vmatpush.xpose.msra.mxu0 0.0
        %1115 = vmatpush.xpose.msra.mxu0 0.0
        %1116 = vmatpush.xpose.msra.mxu0 0.0
        %1117 = vmatpush.xpose.msra.mxu0 0.0
        %1118 = vmatpush.xpose.msra.mxu0 0.0
        %1119 = vmatpush.xpose.msra.mxu0 %v1102
        %1120 = vmatmul.f32.gmra.mxu0 %v1100
        %v1121 = vpop.f32.mrf.mxu0
        %v1122 = vadd.f32 0.0, %v1121
        %1123 = vdwg.mxu0
        %v1124 = vmul.f32 %v1122, 0.35355338
        %v1125 = vsel %vm787, %v1124, -inf
        %1126 = vmax.xlane.f32.xlu0 %v1125
        %v1127 = vpop.xlane.xlu0 %1126
        %v1128 = vsub.f32 %v1124, %v1127
        %v1129 = vmul.f32 %v1128, 1.442695
        %v1130 = vpow.pop %v1129
        %v1131 = vsel %vm787, %v1130, 0.0
        %1132 = vadd.xlane.f32.xlu0 %v1131
        %v1133 = vpop.xlane.xlu0 %1132
        %v1134 = vrcp.pop %v1133
        %v1135 = vmul.f32 %v1133, %v1134
        %v1136 = vsub.f32 1.0, %v1135
        %v1137 = vmul.f32 %v1134, %v1136
        %v1138 = vadd.f32 %v1134, %v1137
        %vm1139 = vweird.f32 %v1133
        %vm1140 = vweird.f32 %v1134
        %vm1141 = vmor %vm1139, %vm1140
        %v1142 = vsel %vm1141, %v1134, %v1138
        %v1143 = vand.u32 2147483647, %v1133
        %vm1144 = vcmp.eq.f32.partialorder %v1143, 8.507059e+37
        %v1145 = vand.u32 %v1133, 2147483648
        %v1146 = vor.u32 1.1754944e-38, %v1145
        %v1147 = vsel %vm1144, %v1146, %v1142
        %v1148 = vmul.f32 %v1130, %v1147
        %1149 = vrot.lane.b32.xlu0 %v781, 104
        %v1150 = vpop.permute.xlu0 %1149
        %v1153 = vsel %vm787, %v1148, 0
        %1155 = vmatpush.msra.mxu0 0.0
        %1156 = vmatpush.msra.mxu0 0.0
        %1157 = vmatpush.msra.mxu0 0.0
        %1158 = vmatpush.msra.mxu0 0.0
        %1159 = vmatpush.msra.mxu0 0.0
        %1160 = vmatpush.msra.mxu0 0.0
        %1161 = vmatpush.msra.mxu0 0.0
        %1162 = vmatpush.msra.mxu0 0.0
        %1163 = vmatpush.msra.mxu0 0.0
        %1164 = vmatpush.msra.mxu0 0.0
        %1165 = vmatpush.msra.mxu0 0.0
        %1166 = vmatpush.msra.mxu0 0.0
        %1167 = vmatpush.msra.mxu0 0.0
        %1168 = vmatpush.msra.mxu0 0.0
        %1169 = vmatpush.msra.mxu0 0.0
        %1170 = vmatpush.msra.mxu0 %v1150
        %1171 = vmatmul.f32.gmra.mxu0 %v1153
        %v1172 = vpop.f32.mrf.mxu0
        %v1173 = vadd.f32 0.0, %v1172
        %1174 = vdwg.mxu0
        %v1175 = vld [vmem:[#allocation13 + $0x18] sm:$0xff]
        %v1177 = vsel %vm787, %v1173, 0
        %1179 = vmatpush.msra.mxu0 0.0
        %1180 = vmatpush.msra.mxu0 0.0
        %1181 = vmatpush.msra.mxu0 0.0
        %1182 = vmatpush.msra.mxu0 0.0
        %1183 = vmatpush.msra.mxu0 0.0
        %1184 = vmatpush.msra.mxu0 0.0
        %1185 = vmatpush.msra.mxu0 0.0
        %1186 = vmatpush.msra.mxu0 0.0
        %1187 = vmatpush.msra.mxu0 0.0
        %1188 = vmatpush.msra.mxu0 0.0
        %1189 = vmatpush.msra.mxu0 0.0
        %1190 = vmatpush.msra.mxu0 0.0
        %1191 = vmatpush.msra.mxu0 0.0
        %1192 = vmatpush.msra.mxu0 0.0
        %1193 = vmatpush.msra.mxu0 0.0
        %1194 = vmatpush.msra.mxu0 %v1175
        %1195 = vmatmul.f32.gmra.mxu0 %v1177
        %v1196 = vpop.f32.mrf.mxu0
        %v1197 = vadd.f32 0.0, %v1196
        %1198 = vdwg.mxu0
        %v1199 = vadd.f32 %v1095, %v1197
        %v1200 = vadd.f32 %v1199, %v686
        %v1201 = vsel %vm697, %v1200, 0.0
        %1202 = vadd.xlane.f32.xlu0 %v1201
        %v1203 = vpop.xlane.xlu0 %1202
        %v1204 = vrot.slane %v1203, 4
        %v1205 = vadd.f32 %v1203, %v1204
        %v1206 = vrot.slane %v1205, 2
        %v1207 = vadd.f32 %v1205, %v1206
        %v1208 = vrot.slane %v1207, 1
        %v1209 = vadd.f32 %v1207, %v1208
        %s1210 = vtos %v1209
        %v1211 = vstv %s1210
        %v1212 = vrcp.pop 256.0
        %v1213 = vmul.f32 256.0, %v1212
        %v1214 = vsub.f32 1.0, %v1213
        %v1215 = vmul.f32 %v1212, %v1214
        %v1216 = vadd.f32 %v1212, %v1215
        %vm1217 = vweird.f32 %v1212
        %v1218 = vsel %vm1217, %v1212, %v1216
        %v1219 = vmul.f32 %v1211, %v1218
        %v1220 = vsub.f32 %v1200, %v1219
        %v1221 = vmul.f32 %v1220, %v1220
        %v1222 = vsel %vm697, %v1221, 0.0
        %1223 = vadd.xlane.f32.xlu0 %v1222
        %v1224 = vpop.xlane.xlu0 %1223
        %v1225 = vrot.slane %v1224, 4
        %v1226 = vadd.f32 %v1224, %v1225
        %v1227 = vrot.slane %v1226, 2
        %v1228 = vadd.f32 %v1226, %v1227
        %v1229 = vrot.slane %v1228, 1
        %v1230 = vadd.f32 %v1228, %v1229
        %s1231 = vtos %v1230
        %v1232 = vstv %s1231
        %v1233 = vmul.f32 %v1232, %v1218
        %v1234 = vadd.f32 %v1233, 1e-05
        %v1235 = vrsqrt.pop %v1234
        %v1236 = vmul.f32 %v1235, %v1234
        %v1237 = vmul.f32 %v1236, %v1235
        %v1238 = vmul.f32 0.5, %v1237
        %v1239 = vsub.f32 1.5, %v1238
        %v1240 = vmul.f32 %v1235, %v1239
        %vm1241 = vweird.f32 %v1234
        %vm1242 = vweird.f32 %v1235
        %vm1243 = vmor %vm1241, %vm1242
        %v1244 = vsel %vm1243, %v1235, %v1240
        %v1245 = vmul.f32 %v1220, %v1244
        %v1246 = vld [vmem:[#allocation14] sm:$0xff]
        %v1247 = vld [vmem:[#allocation14 + $0x8] sm:$0xff]
        %v1248 = vld [vmem:[#allocation14 + $0x10] sm:$0xff]
        %v1249 = vld [vmem:[#allocation14 + $0x18] sm:$0xff]
        %v1250 = vld [vmem:[%s12] sm:$0x1]
        %v1252 = vperm.slane %v1250, 0
        %v1255 = vsel %vm697, %v1245, 0
        %1257 = vmatpush.msra.mxu0 0.0
        %1258 = vmatpush.msra.mxu0 0.0
        %1259 = vmatpush.msra.mxu0 0.0
        %1260 = vmatpush.msra.mxu0 0.0
        %1261 = vmatpush.msra.mxu0 0.0
        %1262 = vmatpush.msra.mxu0 0.0
        %1263 = vmatpush.msra.mxu0 0.0
        %1264 = vmatpush.msra.mxu0 0.0
        %1265 = vmatpush.msra.mxu0 0.0
        %1266 = vmatpush.msra.mxu0 0.0
        %1267 = vmatpush.msra.mxu0 0.0
        %1268 = vmatpush.msra.mxu0 0.0
        %1269 = vmatpush.msra.mxu0 %v1249
        %1270 = vmatpush.msra.mxu0 %v1248
        %1271 = vmatpush.msra.mxu0 %v1247
        %1272 = vmatpush.msra.mxu0 %v1246
        %1273 = vmatmul.f32.gmra.mxu0 %v1255
        %v1274 = vpop.f32.mrf.mxu0
        %v1275 = vadd.f32 %v1252, %v1274
        %1276 = vdwg.mxu0
        %v1277 = vmax.f32 %v1275, 0.0
        %v1278 = vld [vmem:[#allocation16] sm:$0xff]
        %v1279 = vld [vmem:[#allocation16 + $0x8] sm:$0xff]
        %v1280 = vld [vmem:[#allocation16 + $0x10] sm:$0xff]
        %v1281 = vld [vmem:[#allocation16 + $0x18] sm:$0xff]
        %v1282 = vld [vmem:[%s14] sm:$0x1]
        %v1284 = vperm.slane %v1282, 0
        %v1287 = vsel %vm697, %v1277, 0
        %1289 = vmatpush.msra.mxu0 0.0
        %1290 = vmatpush.msra.mxu0 0.0
        %1291 = vmatpush.msra.mxu0 0.0
        %1292 = vmatpush.msra.mxu0 0.0
        %1293 = vmatpush.msra.mxu0 0.0
        %1294 = vmatpush.msra.mxu0 0.0
        %1295 = vmatpush.msra.mxu0 0.0
        %1296 = vmatpush.msra.mxu0 0.0
        %1297 = vmatpush.msra.mxu0 0.0
        %1298 = vmatpush.msra.mxu0 0.0
        %1299 = vmatpush.msra.mxu0 0.0
        %1300 = vmatpush.msra.mxu0 0.0
        %1301 = vmatpush.msra.mxu0 %v1281
        %1302 = vmatpush.msra.mxu0 %v1280
        %1303 = vmatpush.msra.mxu0 %v1279
        %1304 = vmatpush.msra.mxu0 %v1278
        %1305 = vmatmul.f32.gmra.mxu0 %v1287
        %v1306 = vpop.f32.mrf.mxu0
        %v1307 = vadd.f32 %v1284, %v1306
        %1308 = vdwg.mxu0
        %v1309 = vadd.f32 %v1245, %v1307
        %v1310 = vsel %vm697, %v1309, 0.0
        %1311 = vadd.xlane.f32.xlu0 %v1310
        %v1312 = vpop.xlane.xlu0 %1311
        %v1313 = vrot.slane %v1312, 4
        %v1314 = vadd.f32 %v1312, %v1313
        %v1315 = vrot.slane %v1314, 2
        %v1316 = vadd.f32 %v1314, %v1315
        %v1317 = vrot.slane %v1316, 1
        %v1318 = vadd.f32 %v1316, %v1317
        %s1319 = vtos %v1318
        %v1320 = vstv %s1319
        %v1321 = vmul.f32 %v1320, %v1218
        %v1322 = vsub.f32 %v1309, %v1321
        %v1323 = vmul.f32 %v1322, %v1322
        %v1324 = vsel %vm697, %v1323, 0.0
        %1325 = vadd.xlane.f32.xlu0 %v1324
        %v1326 = vpop.xlane.xlu0 %1325
        %v1327 = vrot.slane %v1326, 4
        %v1328 = vadd.f32 %v1326, %v1327
        %v1329 = vrot.slane %v1328, 2
        %v1330 = vadd.f32 %v1328, %v1329
        %v1331 = vrot.slane %v1330, 1
        %v1332 = vadd.f32 %v1330, %v1331
        %s1333 = vtos %v1332
        %v1334 = vstv %s1333
        %v1335 = vmul.f32 %v1334, %v1218
        %v1336 = vadd.f32 %v1335, 1e-05
        %v1337 = vrsqrt.pop %v1336
        %v1338 = vmul.f32 %v1337, %v1336
        %v1339 = vmul.f32 %v1338, %v1337
        %v1340 = vmul.f32 0.5, %v1339
        %v1341 = vsub.f32 1.5, %v1340
        %v1342 = vmul.f32 %v1337, %v1341
        %vm1343 = vweird.f32 %v1336
        %vm1344 = vweird.f32 %v1337
        %vm1345 = vmor %vm1343, %vm1344
        %v1346 = vsel %vm1345, %v1337, %v1342
        %v1347 = vmul.f32 %v1322, %v1346
        %1348 = vst.msk [vmem:[%s685] sm:$0xff] %vm697, %v1347
        %s1349 = sand.u32 %s376, 1
        %s1350 = scalar_lea.sflag [#allocation4], %s1349
        %s1351 = sand.u32 %s376, 1
        %s1352 = smul.addr %s1351, 8
        %s1353 = scalar_lea.vmem [#allocation17], %s1352
        // Predicated region
        $region117: #{tpu_custom_call.1} parent=79 // pred_check
          %p1354 = pneg %p386
        $region118: #{tpu_custom_call.1} parent=79 // pred_check_branch
          %1356 = sbr.rel (%p1354) target = $region120
        $region119: #{tpu_custom_call.1} parent=79 // pred_region
          %1358 = vsyncadd %s1350, 0
          %s1359 = smul.addr %s38, 8
          %s1360 = scalar_lea.hbm %s15, %s1359
          %s1362 = sshll.u32 %s1353, 4
          %s1363 = int_to_ptr.vmem [resolvable:$true] %s1362
          %s1364 = sshll.u32 %s1360, 4
          %s1365 = int_to_ptr.hbm [resolvable:$true] %s1364
          %1367 = dma.vmem_to_hbm [thread:$0]  %s1363, 128, %s1365, %s1350
        $region120: #{tpu_custom_call.1} parent=79 // pred_fallthru
          _
      $region80: #{tpu_custom_call.1} parent=5 // pred_fallthru
        _
      %p1368 = scmp.le.s32.totalorder 2, %s33
      // Predicated region
      $region121: #{tpu_custom_call.1} parent=5 // pred_check
        %p1369 = pneg %p1368
      $region122: #{tpu_custom_call.1} parent=5 // pred_check_branch
        %1371 = sbr.rel (%p1369) target = $region124
      $region123: #{tpu_custom_call.1} parent=5 // pred_region
        %s1372 = ssub.s32 %s33, 2
        // Predicated region
        $region125: #{tpu_custom_call.1} parent=123 // pred_check
          %p1373 = pneg %p392
        $region126: #{tpu_custom_call.1} parent=123 // pred_check_branch
          %1375 = sbr.rel (%p1373) target = $region128
        $region127: #{tpu_custom_call.1} parent=123 // pred_region
          %s1376 = sand.u32 %s377, 1
          %s1377 = scalar_lea.sflag [#allocation4], %s1376
          %s1378 = sand.u32 %s377, 1
          %s1379 = smul.addr %s1378, 8
          %s1380 = scalar_lea.vmem [#allocation17], %s1379
          %1382 = dma.done %s1377, 128
        $region128: #{tpu_custom_call.1} parent=123 // pred_fallthru
          _
      $region124: #{tpu_custom_call.1} parent=5 // pred_fallthru
        _
    $region6: #{tpu_custom_call.1} parent=1 // loop_footer
      %s37 = sadd.s32 1, %s33
    $region7: #{tpu_custom_call.1} parent=1 // loop_footer_branch
      %32 = sbr.rel target = $region3
    $region8: #{tpu_custom_call.1} parent=1 // loop_exit
      _
    %1383 = vsyncpa [#allocation3], 1
    %s1384 = scalar_lea.sflag [#allocation3], 1
    %1385 = vsyncpa %s1384, 1
    %1386 = vsyncpa [#allocation6], 1
    %s1387 = scalar_lea.sflag [#allocation6], 1
    %1388 = vsyncpa %s1387, 1
    %1389 = vsyncpa [#allocation9], 1
    %1390 = vsyncpa [#allocation12], 1
    %1391 = vsyncpa [#allocation15], 1
    %1392 = vsyncpa [#allocation4], 1
    %s1393 = scalar_lea.sflag [#allocation4], 1
    %1394 = vsyncpa %s1393, 1

</llo_original>
